<compile_context>
chip_gen: v5e
topology: v5e:2x2
jax: 0.10.0
libtpu: 0.0.40
codegen_flags: <defaults>
</compile_context>

<pallas_src>
import jax
import jax.numpy as jnp
import numpy as np
from jax.experimental import pallas as pl
from jax.experimental.pallas import tpu as pltpu

G = 2          # GroupNorm num_groups
EPS = 1e-5     # GroupNorm eps


def _default_ew_dtype():
    """bf16 elementwise tap construction only where the VPU has native bf16."""
    try:
        kind = jax.devices()[0].device_kind.lower()
    except Exception:
        return jnp.float32
    if "v6" in kind or "v7" in kind:
        return jnp.bfloat16
    return jnp.float32


def _pick_samples_per_block(n):
    """Fold samples into lanes, but keep >= 2 grid steps (v7x has 2 TCs)."""
    if n <= 1:
        return 1
    s = n // 2
    while s > 1 and n % s:
        s -= 1
    return max(s, 1)


def make_basic_block_kernel(C, H, W, S, ew_dtype):
    HW = H * W
    L = S * HW
    CPG = C // G
    inv_cnt = 1.0 / float(CPG * HW)

    # Lane shift of the source pixel for each tap, in (ky, kx) order that
    # matches the (C, 9C) weight reshape.
    tap_shifts = [(ky - 1) * W + (kx - 1) for ky in range(3) for kx in range(3)]

    def kernel(x_ref, mask_ref, w1_ref, w2_ref, gn_ref, out_ref, patches_ref):
        x_f32 = x_ref[...].astype(jnp.float32)            # (C, L), lane-dense
        mask = mask_ref[...]                               # (9, L), ew_dtype
        gnp = gn_ref[...]                                  # (C, 4) = [g1 b1 g2 b2]
        g1, b1 = gnp[:, 0:1], gnp[:, 1:2]
        g2, b2 = gnp[:, 2:3], gnp[:, 3:4]

        row = jax.lax.broadcasted_iota(jnp.int32, (C, 1), 0)

        def group_reduce(col):
            # col: (C, 1) f32 -> each row receives the sum of its group's rows.
            out = jnp.zeros((C, 1), jnp.float32)
            for g in range(G):
                sel = (row >= g * CPG) & (row < (g + 1) * CPG)
                gsum = jnp.sum(jnp.where(sel, col, 0.0))
                out = jnp.where(sel, gsum, out)
            return out

        def conv3x3(inp_ew, w_ref):
            # inp_ew: (C, L) in ew_dtype -> (C, L) f32 via one fused K=9C matmul.
            # Tap pieces stream into the bf16 VMEM scratch (bounded live ranges).
            for t, d in enumerate(tap_shifts):
                if d == 0:
                    piece = inp_ew                        # center tap, mask == 1
                else:
                    piece = pltpu.roll(inp_ew, shift=(-d) % L, axis=1) * mask[t:t + 1, :]
                patches_ref[pl.ds(t * C, C), :] = piece.astype(jnp.bfloat16)
            return jnp.dot(w_ref[...], patches_ref[...],
                           preferred_element_type=jnp.float32)

        def group_norm(y, gamma, beta):
            # y: (C, L) f32.  Per-(sample, group) stats via row sums (two-pass),
            # fused per-channel scale/shift apply (1 mul + 1 add over the slab).
            segs = []
            for s in range(S):
                y_s = y[:, s * HW:(s + 1) * HW]
                mean = group_reduce(jnp.sum(y_s, axis=1, keepdims=True)) * inv_cnt
                cen = y_s - mean
                var = group_reduce(jnp.sum(cen * cen, axis=1, keepdims=True)) * inv_cnt
                scale = gamma * jax.lax.rsqrt(var + EPS)   # (C, 1)
                segs.append(cen * scale + beta)
            return segs[0] if S == 1 else jnp.concatenate(segs, axis=1)

        x_ew = x_f32.astype(ew_dtype)

        h = conv3x3(x_ew, w1_ref)
        h = jnp.maximum(group_norm(h, g1, b1), 0.0)

        h = conv3x3(h.astype(ew_dtype), w2_ref)
        h = group_norm(h, g2, b2)

        out_ref[...] = jnp.maximum(h + x_f32, 0.0).astype(out_ref.dtype)

    return kernel


def basic_block(x_nchw, w1, g1, b1, w2, g2, b2, *,
                samples_per_block=None, ew_dtype=None):
    """x_nchw: (N, C, H, W) f32; conv weights (C, C, 3, 3) OIHW (PyTorch)."""
    n, c, h, w = x_nchw.shape
    assert c % G == 0
    hw = h * w

    if ew_dtype is None:
        ew_dtype = _default_ew_dtype()
    if samples_per_block is None:
        samples_per_block = _pick_samples_per_block(n)
    s = samples_per_block
    assert n % s == 0, "samples_per_block must divide batch"
    num_blocks = n // s
    L = s * hw

    # Channel-major, batch folded into lanes: (C, N*HW).  One tiny XLA transpose.
    x2 = jnp.transpose(x_nchw, (1, 0, 2, 3)).reshape(c, n * hw)

    # OIHW -> (Cout, 9*Cin): W2d[co, (ky*3+kx)*Cin + ci] = w[co, ci, ky, kx]
    w1r = jnp.transpose(w1, (0, 2, 3, 1)).reshape(c, 9 * c).astype(jnp.bfloat16)
    w2r = jnp.transpose(w2, (0, 2, 3, 1)).reshape(c, 9 * c).astype(jnp.bfloat16)

    # All GroupNorm affine params packed into a single (C, 4) block.
    gn_params = jnp.stack([g1, b1, g2, b2], axis=1).astype(jnp.float32)

    # 3x3 tap boundary masks, hoisted out of the kernel (built from lane % HW,
    # so rolls never leak pixels across sample boundaries when batch is folded).
    lane = np.arange(hw)
    hi, wi = lane // w, lane % w
    mask9 = np.zeros((9, hw), np.float32)
    for ky in range(3):
        for kx in range(3):
            dy, dx = ky - 1, kx - 1
            mask9[ky * 3 + kx] = ((hi + dy >= 0) & (hi + dy < h)
                                  & (wi + dx >= 0) & (wi + dx < w))
    mask = jnp.asarray(np.tile(mask9, (1, s)), ew_dtype)       # (9, S*HW)

    kernel = make_basic_block_kernel(c, h, w, s, ew_dtype)

    out = pl.pallas_call(
        kernel,
        out_shape=jax.ShapeDtypeStruct((c, n * hw), x_nchw.dtype),
        grid=(num_blocks,),
        in_specs=[
            pl.BlockSpec((c, L), lambda i: (0, i)),            # x slab (S samples)
            pl.BlockSpec((9, L), lambda i: (0, 0)),            # tap masks
            pl.BlockSpec((c, 9 * c), lambda i: (0, 0)),        # conv1 weight
            pl.BlockSpec((c, 9 * c), lambda i: (0, 0)),        # conv2 weight
            pl.BlockSpec((c, 4), lambda i: (0, 0)),            # [g1 b1 g2 b2]
        ],
        out_specs=pl.BlockSpec((c, L), lambda i: (0, i)),
        scratch_shapes=[pltpu.VMEM((9 * c, L), jnp.bfloat16)], # conv patches
        compiler_params=pltpu.CompilerParams(
            dimension_semantics=("parallel",)),
    )(x2, mask, w1r, w2r, gn_params)

    return jnp.transpose(out.reshape(c, n, hw), (1, 0, 2)).reshape(n, c, h, w)


def basic_block_ref(x, w1, g1, b1, w2, g2, b2):
    """Pure-JAX reference (NCHW, mirrors the PyTorch forward)."""
    def conv(y, wt):
        return jax.lax.conv_general_dilated(
            y, wt, window_strides=(1, 1), padding=((1, 1), (1, 1)),
            dimension_numbers=("NCHW", "OIHW", "NCHW"),
            precision=jax.lax.Precision.HIGHEST)

    def gn(y, g, b):
        n, c, h, w = y.shape
        yg = y.reshape(n, G, c // G, h * w)
        mean = yg.mean(axis=(2, 3), keepdims=True)
        var = ((yg - mean) ** 2).mean(axis=(2, 3), keepdims=True)
        yn = ((yg - mean) / jnp.sqrt(var + EPS)).reshape(n, c, h, w)
        return yn * g.reshape(1, c, 1, 1) + b.reshape(1, c, 1, 1)

    out = jax.nn.relu(gn(conv(x, w1), g1, b1))
    out = gn(conv(out, w2), g2, b2)
    return jax.nn.relu(out + x)


if __name__ == "__main__":
    # BasicBlock(inplanes=8, planes=8, stride=1, downsample=None)
    N, C, H, W = 2, 8, 16, 16
    key = jax.random.PRNGKey(0)
    kx, k1, k2, kg1, kb1, kg2, kb2 = jax.random.split(key, 7)

    x = jax.random.normal(kx, (N, C, H, W), jnp.float32)
    w1 = 0.1 * jax.random.normal(k1, (C, C, 3, 3), jnp.float32)   # conv1.weight
    w2 = 0.1 * jax.random.normal(k2, (C, C, 3, 3), jnp.float32)   # conv2.weight
    g1 = 1.0 + 0.1 * jax.random.normal(kg1, (C,), jnp.float32)    # bn1.weight
    b1 = 0.1 * jax.random.normal(kb1, (C,), jnp.float32)          # bn1.bias
    g2 = 1.0 + 0.1 * jax.random.normal(kg2, (C,), jnp.float32)    # bn2.weight
    b2 = 0.1 * jax.random.normal(kb2, (C,), jnp.float32)          # bn2.bias

    ref = jax.block_until_ready(basic_block_ref(x, w1, g1, b1, w2, g2, b2))

    # Default path: 2 grid steps x 1 sample (keeps both v7x TensorCores busy).
    out = jax.block_until_ready(basic_block(x, w1, g1, b1, w2, g2, b2))
    # Batch-folded path: 1 grid step, both samples in the lane axis
    # (the fewer/fatter-steps path preferred on single-TC v5e/v6e).
    out_folded = jax.block_until_ready(
        basic_block(x, w1, g1, b1, w2, g2, b2, samples_per_block=2))

    # bf16 MXU operands (f32 accumulation) limit agreement with the f32
    # Precision.HIGHEST reference to ~1e-2 relative.
    tol = dict(atol=3e-2, rtol=3e-2)
    if not np.allclose(np.asarray(out), np.asarray(ref), **tol):
        raise AssertionError("Pallas BasicBlock (2-step grid) does not match reference")
    if not np.allclose(np.asarray(out_folded), np.asarray(ref), **tol):
        raise AssertionError("Pallas BasicBlock (batch-folded) does not match reference")
    print("KERNEL_OK")
</pallas_src>

<mosaic_0001>
module attributes {stable_mosaic.version = 11 : i64} {
  func.func @kernel(%arg0: i32, %arg1: memref<8x256xf32, #tpu.memory_space<vmem>>, %arg2: memref<9x256xf32, #tpu.memory_space<vmem>>, %arg3: memref<8x72xbf16, #tpu.memory_space<vmem>>, %arg4: memref<8x72xbf16, #tpu.memory_space<vmem>>, %arg5: memref<8x4xf32, #tpu.memory_space<vmem>>, %arg6: memref<8x256xf32, #tpu.memory_space<vmem>>, %arg7: memref<72x256xbf16, #tpu.memory_space<vmem>>) attributes {dimension_semantics = [#tpu.dimension_semantics<parallel>], iteration_bounds = array<i64: 2>, scalar_prefetch = 0 : i64, scratch_operands = 1 : i64, tpu.core_type = #tpu.core_type<tc>, window_params = [{transform_indices = @transform_0, window_bounds = array<i64: 8, 256>}, {pipeline_mode = #tpu.pipeline_mode<synchronous>, transform_indices = @transform_1, window_bounds = array<i64: 9, 256>}, {pipeline_mode = #tpu.pipeline_mode<synchronous>, transform_indices = @transform_2, window_bounds = array<i64: 8, 72>}, {pipeline_mode = #tpu.pipeline_mode<synchronous>, transform_indices = @transform_3, window_bounds = array<i64: 8, 72>}, {pipeline_mode = #tpu.pipeline_mode<synchronous>, transform_indices = @transform_4, window_bounds = array<i64: 8, 4>}, {transform_indices = @transform_5, window_bounds = array<i64: 8, 256>}]} {
    %c0 = arith.constant 0 : index
    %c0_0 = arith.constant 0 : index
    %0 = vector.load %arg1[%c0, %c0_0] : memref<8x256xf32, #tpu.memory_space<vmem>>, vector<8x256xf32>
    %c0_1 = arith.constant 0 : index
    %c0_2 = arith.constant 0 : index
    %1 = vector.load %arg2[%c0_1, %c0_2] : memref<9x256xf32, #tpu.memory_space<vmem>>, vector<9x256xf32>
    %c0_3 = arith.constant 0 : index
    %c0_4 = arith.constant 0 : index
    %2 = vector.load %arg5[%c0_3, %c0_4] : memref<8x4xf32, #tpu.memory_space<vmem>>, vector<8x4xf32>
    %3 = vector.extract_strided_slice %2 {offsets = [0, 0], sizes = [8, 1], strides = [1, 1]} : vector<8x4xf32> to vector<8x1xf32>
    %4 = vector.extract_strided_slice %2 {offsets = [0, 1], sizes = [8, 1], strides = [1, 1]} : vector<8x4xf32> to vector<8x1xf32>
    %5 = vector.extract_strided_slice %2 {offsets = [0, 2], sizes = [8, 1], strides = [1, 1]} : vector<8x4xf32> to vector<8x1xf32>
    %6 = vector.extract_strided_slice %2 {offsets = [0, 3], sizes = [8, 1], strides = [1, 1]} : vector<8x4xf32> to vector<8x1xf32>
    %7 = tpu.iota {dimensions = array<i32: 0>} : vector<8x1xi32>
    %c17_i32 = arith.constant 17 : i32
    %8 = tpu.dynamic_rotate %0 by %c17_i32 dim 1 : vector<8x256xf32>, i32 -> vector<8x256xf32>
    %9 = vector.extract_strided_slice %1 {offsets = [0, 0], sizes = [1, 256], strides = [1, 1]} : vector<9x256xf32> to vector<1x256xf32>
    %10 = vector.broadcast %9 : vector<1x256xf32> to vector<8x256xf32>
    %11 = arith.mulf %8, %10 : vector<8x256xf32>
    %12 = arith.truncf %11 : vector<8x256xf32> to vector<8x256xbf16>
    %c0_5 = arith.constant 0 : index
    %c0_6 = arith.constant 0 : index
    %13 = vector.load %arg7[%c0_5, %c0_6] : memref<72x256xbf16, #tpu.memory_space<vmem>>, vector<8x256xbf16>
    tpu.vector_store %arg7[%c0_5, %c0_6], %12 {strides = array<i32>} : memref<72x256xbf16, #tpu.memory_space<vmem>>, vector<8x256xbf16>,
    %c16_i32 = arith.constant 16 : i32
    %14 = tpu.dynamic_rotate %0 by %c16_i32 dim 1 : vector<8x256xf32>, i32 -> vector<8x256xf32>
    %15 = vector.extract_strided_slice %1 {offsets = [1, 0], sizes = [1, 256], strides = [1, 1]} : vector<9x256xf32> to vector<1x256xf32>
    %16 = vector.broadcast %15 : vector<1x256xf32> to vector<8x256xf32>
    %17 = arith.mulf %14, %16 : vector<8x256xf32>
    %18 = arith.truncf %17 : vector<8x256xf32> to vector<8x256xbf16>
    %c8 = arith.constant 8 : index
    %c0_7 = arith.constant 0 : index
    %19 = vector.load %arg7[%c8, %c0_7] : memref<72x256xbf16, #tpu.memory_space<vmem>>, vector<8x256xbf16>
    tpu.vector_store %arg7[%c8, %c0_7], %18 {strides = array<i32>} : memref<72x256xbf16, #tpu.memory_space<vmem>>, vector<8x256xbf16>,
    %c15_i32 = arith.constant 15 : i32
    %20 = tpu.dynamic_rotate %0 by %c15_i32 dim 1 : vector<8x256xf32>, i32 -> vector<8x256xf32>
    %21 = vector.extract_strided_slice %1 {offsets = [2, 0], sizes = [1, 256], strides = [1, 1]} : vector<9x256xf32> to vector<1x256xf32>
    %22 = vector.broadcast %21 : vector<1x256xf32> to vector<8x256xf32>
    %23 = arith.mulf %20, %22 : vector<8x256xf32>
    %24 = arith.truncf %23 : vector<8x256xf32> to vector<8x256xbf16>
    %c16 = arith.constant 16 : index
    %c0_8 = arith.constant 0 : index
    %25 = vector.load %arg7[%c16, %c0_8] : memref<72x256xbf16, #tpu.memory_space<vmem>>, vector<8x256xbf16>
    tpu.vector_store %arg7[%c16, %c0_8], %24 {strides = array<i32>} : memref<72x256xbf16, #tpu.memory_space<vmem>>, vector<8x256xbf16>,
    %c1_i32 = arith.constant 1 : i32
    %26 = tpu.dynamic_rotate %0 by %c1_i32 dim 1 : vector<8x256xf32>, i32 -> vector<8x256xf32>
    %27 = vector.extract_strided_slice %1 {offsets = [3, 0], sizes = [1, 256], strides = [1, 1]} : vector<9x256xf32> to vector<1x256xf32>
    %28 = vector.broadcast %27 : vector<1x256xf32> to vector<8x256xf32>
    %29 = arith.mulf %26, %28 : vector<8x256xf32>
    %30 = arith.truncf %29 : vector<8x256xf32> to vector<8x256xbf16>
    %c24 = arith.constant 24 : index
    %c0_9 = arith.constant 0 : index
    %31 = vector.load %arg7[%c24, %c0_9] : memref<72x256xbf16, #tpu.memory_space<vmem>>, vector<8x256xbf16>
    tpu.vector_store %arg7[%c24, %c0_9], %30 {strides = array<i32>} : memref<72x256xbf16, #tpu.memory_space<vmem>>, vector<8x256xbf16>,
    %32 = arith.truncf %0 : vector<8x256xf32> to vector<8x256xbf16>
    %c32 = arith.constant 32 : index
    %c0_10 = arith.constant 0 : index
    %33 = vector.load %arg7[%c32, %c0_10] : memref<72x256xbf16, #tpu.memory_space<vmem>>, vector<8x256xbf16>
    tpu.vector_store %arg7[%c32, %c0_10], %32 {strides = array<i32>} : memref<72x256xbf16, #tpu.memory_space<vmem>>, vector<8x256xbf16>,
    %c255_i32 = arith.constant 255 : i32
    %34 = tpu.dynamic_rotate %0 by %c255_i32 dim 1 : vector<8x256xf32>, i32 -> vector<8x256xf32>
    %35 = vector.extract_strided_slice %1 {offsets = [5, 0], sizes = [1, 256], strides = [1, 1]} : vector<9x256xf32> to vector<1x256xf32>
    %36 = vector.broadcast %35 : vector<1x256xf32> to vector<8x256xf32>
    %37 = arith.mulf %34, %36 : vector<8x256xf32>
    %38 = arith.truncf %37 : vector<8x256xf32> to vector<8x256xbf16>
    %c40 = arith.constant 40 : index
    %c0_11 = arith.constant 0 : index
    %39 = vector.load %arg7[%c40, %c0_11] : memref<72x256xbf16, #tpu.memory_space<vmem>>, vector<8x256xbf16>
    tpu.vector_store %arg7[%c40, %c0_11], %38 {strides = array<i32>} : memref<72x256xbf16, #tpu.memory_space<vmem>>, vector<8x256xbf16>,
    %c241_i32 = arith.constant 241 : i32
    %40 = tpu.dynamic_rotate %0 by %c241_i32 dim 1 : vector<8x256xf32>, i32 -> vector<8x256xf32>
    %41 = vector.extract_strided_slice %1 {offsets = [6, 0], sizes = [1, 256], strides = [1, 1]} : vector<9x256xf32> to vector<1x256xf32>
    %42 = vector.broadcast %41 : vector<1x256xf32> to vector<8x256xf32>
    %43 = arith.mulf %40, %42 : vector<8x256xf32>
    %44 = arith.truncf %43 : vector<8x256xf32> to vector<8x256xbf16>
    %c48 = arith.constant 48 : index
    %c0_12 = arith.constant 0 : index
    %45 = vector.load %arg7[%c48, %c0_12] : memref<72x256xbf16, #tpu.memory_space<vmem>>, vector<8x256xbf16>
    tpu.vector_store %arg7[%c48, %c0_12], %44 {strides = array<i32>} : memref<72x256xbf16, #tpu.memory_space<vmem>>, vector<8x256xbf16>,
    %c240_i32 = arith.constant 240 : i32
    %46 = tpu.dynamic_rotate %0 by %c240_i32 dim 1 : vector<8x256xf32>, i32 -> vector<8x256xf32>
    %47 = vector.extract_strided_slice %1 {offsets = [7, 0], sizes = [1, 256], strides = [1, 1]} : vector<9x256xf32> to vector<1x256xf32>
    %48 = vector.broadcast %47 : vector<1x256xf32> to vector<8x256xf32>
    %49 = arith.mulf %46, %48 : vector<8x256xf32>
    %50 = arith.truncf %49 : vector<8x256xf32> to vector<8x256xbf16>
    %c56 = arith.constant 56 : index
    %c0_13 = arith.constant 0 : index
    %51 = vector.load %arg7[%c56, %c0_13] : memref<72x256xbf16, #tpu.memory_space<vmem>>, vector<8x256xbf16>
    tpu.vector_store %arg7[%c56, %c0_13], %50 {strides = array<i32>} : memref<72x256xbf16, #tpu.memory_space<vmem>>, vector<8x256xbf16>,
    %c239_i32 = arith.constant 239 : i32
    %52 = tpu.dynamic_rotate %0 by %c239_i32 dim 1 : vector<8x256xf32>, i32 -> vector<8x256xf32>
    %53 = vector.extract_strided_slice %1 {offsets = [8, 0], sizes = [1, 256], strides = [1, 1]} : vector<9x256xf32> to vector<1x256xf32>
    %54 = vector.broadcast %53 : vector<1x256xf32> to vector<8x256xf32>
    %55 = arith.mulf %52, %54 : vector<8x256xf32>
    %56 = arith.truncf %55 : vector<8x256xf32> to vector<8x256xbf16>
    %c64 = arith.constant 64 : index
    %c0_14 = arith.constant 0 : index
    %57 = vector.load %arg7[%c64, %c0_14] : memref<72x256xbf16, #tpu.memory_space<vmem>>, vector<8x256xbf16>
    tpu.vector_store %arg7[%c64, %c0_14], %56 {strides = array<i32>} : memref<72x256xbf16, #tpu.memory_space<vmem>>, vector<8x256xbf16>,
    %c0_15 = arith.constant 0 : index
    %c0_16 = arith.constant 0 : index
    %58 = vector.load %arg3[%c0_15, %c0_16] : memref<8x72xbf16, #tpu.memory_space<vmem>>, vector<8x72xbf16>
    %c0_17 = arith.constant 0 : index
    %c0_18 = arith.constant 0 : index
    %59 = vector.load %arg7[%c0_17, %c0_18] : memref<72x256xbf16, #tpu.memory_space<vmem>>, vector<72x256xbf16>
    %cst = arith.constant dense<0.000000e+00> : vector<8x256xf32>
    %60 = tpu.matmul %58, %59, %cst {dimension_numbers = #tpu.dot_dimension_numbers<[1], [0], [0], [1], [0, 0, 1, 1], [], []>} : vector<8x72xbf16>, vector<72x256xbf16>, vector<8x256xf32> -> vector<8x256xf32>
    %cst_19 = arith.constant dense<0.000000e+00> : vector<8xf32>
    %61 = vector.multi_reduction <add>, %60, %cst_19 [1] : vector<8x256xf32> to vector<8xf32>
    %62 = vector.shape_cast %61 : vector<8xf32> to vector<8x1xf32>
    %cst_20 = arith.constant 0.000000e+00 : f32
    %63 = vector.broadcast %cst_20 : f32 to vector<8x1xf32>
    %c0_i32 = arith.constant 0 : i32
    %64 = vector.broadcast %c0_i32 : i32 to vector<8x1xi32>
    %65 = arith.cmpi sge, %7, %64 : vector<8x1xi32>
    %c4_i32 = arith.constant 4 : i32
    %66 = vector.broadcast %c4_i32 : i32 to vector<8x1xi32>
    %67 = arith.cmpi slt, %7, %66 : vector<8x1xi32>
    %68 = arith.andi %65, %67 : vector<8x1xi1>
    %cst_21 = arith.constant 0.000000e+00 : f32
    %69 = vector.broadcast %cst_21 : f32 to vector<8x1xf32>
    %70 = arith.select %68, %62, %69 : vector<8x1xi1>, vector<8x1xf32>
    %71 = vector.shape_cast %70 : vector<8x1xf32> to vector<1x8x1xf32>
    %cst_22 = arith.constant dense<0.000000e+00> : vector<1xf32>
    %72 = vector.multi_reduction <add>, %71, %cst_22 [1, 2] : vector<1x8x1xf32> to vector<1xf32>
    %73 = vector.shape_cast %72 : vector<1xf32> to vector<1x1x1xf32>
    %74 = vector.extract %73[0, 0, 0] : f32 from vector<1x1x1xf32>
    %75 = vector.broadcast %74 : f32 to vector<8x1xf32>
    %76 = arith.select %68, %75, %63 : vector<8x1xi1>, vector<8x1xf32>
    %c4_i32_23 = arith.constant 4 : i32
    %77 = vector.broadcast %c4_i32_23 : i32 to vector<8x1xi32>
    %78 = arith.cmpi sge, %7, %77 : vector<8x1xi32>
    %c8_i32 = arith.constant 8 : i32
    %79 = vector.broadcast %c8_i32 : i32 to vector<8x1xi32>
    %80 = arith.cmpi slt, %7, %79 : vector<8x1xi32>
    %81 = arith.andi %78, %80 : vector<8x1xi1>
    %cst_24 = arith.constant 0.000000e+00 : f32
    %82 = vector.broadcast %cst_24 : f32 to vector<8x1xf32>
    %83 = arith.select %81, %62, %82 : vector<8x1xi1>, vector<8x1xf32>
    %84 = vector.shape_cast %83 : vector<8x1xf32> to vector<1x8x1xf32>
    %cst_25 = arith.constant dense<0.000000e+00> : vector<1xf32>
    %85 = vector.multi_reduction <add>, %84, %cst_25 [1, 2] : vector<1x8x1xf32> to vector<1xf32>
    %86 = vector.shape_cast %85 : vector<1xf32> to vector<1x1x1xf32>
    %87 = vector.extract %86[0, 0, 0] : f32 from vector<1x1x1xf32>
    %88 = vector.broadcast %87 : f32 to vector<8x1xf32>
    %89 = arith.select %81, %88, %76 : vector<8x1xi1>, vector<8x1xf32>
    %cst_26 = arith.constant 9.765625E-4 : f32
    %90 = vector.broadcast %cst_26 : f32 to vector<8x1xf32>
    %91 = arith.mulf %89, %90 : vector<8x1xf32>
    %92 = vector.broadcast %91 : vector<8x1xf32> to vector<8x256xf32>
    %93 = arith.subf %60, %92 : vector<8x256xf32>
    %94 = arith.mulf %93, %93 : vector<8x256xf32>
    %cst_27 = arith.constant dense<0.000000e+00> : vector<8xf32>
    %95 = vector.multi_reduction <add>, %94, %cst_27 [1] : vector<8x256xf32> to vector<8xf32>
    %96 = vector.shape_cast %95 : vector<8xf32> to vector<8x1xf32>
    %cst_28 = arith.constant 0.000000e+00 : f32
    %97 = vector.broadcast %cst_28 : f32 to vector<8x1xf32>
    %c0_i32_29 = arith.constant 0 : i32
    %98 = vector.broadcast %c0_i32_29 : i32 to vector<8x1xi32>
    %99 = arith.cmpi sge, %7, %98 : vector<8x1xi32>
    %c4_i32_30 = arith.constant 4 : i32
    %100 = vector.broadcast %c4_i32_30 : i32 to vector<8x1xi32>
    %101 = arith.cmpi slt, %7, %100 : vector<8x1xi32>
    %102 = arith.andi %99, %101 : vector<8x1xi1>
    %cst_31 = arith.constant 0.000000e+00 : f32
    %103 = vector.broadcast %cst_31 : f32 to vector<8x1xf32>
    %104 = arith.select %102, %96, %103 : vector<8x1xi1>, vector<8x1xf32>
    %105 = vector.shape_cast %104 : vector<8x1xf32> to vector<1x8x1xf32>
    %cst_32 = arith.constant dense<0.000000e+00> : vector<1xf32>
    %106 = vector.multi_reduction <add>, %105, %cst_32 [1, 2] : vector<1x8x1xf32> to vector<1xf32>
    %107 = vector.shape_cast %106 : vector<1xf32> to vector<1x1x1xf32>
    %108 = vector.extract %107[0, 0, 0] : f32 from vector<1x1x1xf32>
    %109 = vector.broadcast %108 : f32 to vector<8x1xf32>
    %110 = arith.select %102, %109, %97 : vector<8x1xi1>, vector<8x1xf32>
    %c4_i32_33 = arith.constant 4 : i32
    %111 = vector.broadcast %c4_i32_33 : i32 to vector<8x1xi32>
    %112 = arith.cmpi sge, %7, %111 : vector<8x1xi32>
    %c8_i32_34 = arith.constant 8 : i32
    %113 = vector.broadcast %c8_i32_34 : i32 to vector<8x1xi32>
    %114 = arith.cmpi slt, %7, %113 : vector<8x1xi32>
    %115 = arith.andi %112, %114 : vector<8x1xi1>
    %cst_35 = arith.constant 0.000000e+00 : f32
    %116 = vector.broadcast %cst_35 : f32 to vector<8x1xf32>
    %117 = arith.select %115, %96, %116 : vector<8x1xi1>, vector<8x1xf32>
    %118 = vector.shape_cast %117 : vector<8x1xf32> to vector<1x8x1xf32>
    %cst_36 = arith.constant dense<0.000000e+00> : vector<1xf32>
    %119 = vector.multi_reduction <add>, %118, %cst_36 [1, 2] : vector<1x8x1xf32> to vector<1xf32>
    %120 = vector.shape_cast %119 : vector<1xf32> to vector<1x1x1xf32>
    %121 = vector.extract %120[0, 0, 0] : f32 from vector<1x1x1xf32>
    %122 = vector.broadcast %121 : f32 to vector<8x1xf32>
    %123 = arith.select %115, %122, %110 : vector<8x1xi1>, vector<8x1xf32>
    %cst_37 = arith.constant 9.765625E-4 : f32
    %124 = vector.broadcast %cst_37 : f32 to vector<8x1xf32>
    %125 = arith.mulf %123, %124 : vector<8x1xf32>
    %cst_38 = arith.constant 9.99999974E-6 : f32
    %126 = vector.broadcast %cst_38 : f32 to vector<8x1xf32>
    %127 = arith.addf %125, %126 : vector<8x1xf32>
    %128 = math.rsqrt %127 : vector<8x1xf32>
    %129 = arith.mulf %3, %128 : vector<8x1xf32>
    %130 = vector.broadcast %129 : vector<8x1xf32> to vector<8x256xf32>
    %131 = arith.mulf %93, %130 : vector<8x256xf32>
    %132 = vector.broadcast %4 : vector<8x1xf32> to vector<8x256xf32>
    %133 = arith.addf %131, %132 : vector<8x256xf32>
    %cst_39 = arith.constant 0.000000e+00 : f32
    %134 = vector.broadcast %cst_39 : f32 to vector<8x256xf32>
    %135 = arith.maximumf %133, %134 : vector<8x256xf32>
    %c17_i32_40 = arith.constant 17 : i32
    %136 = tpu.dynamic_rotate %135 by %c17_i32_40 dim 1 : vector<8x256xf32>, i32 -> vector<8x256xf32>
    %137 = vector.extract_strided_slice %1 {offsets = [0, 0], sizes = [1, 256], strides = [1, 1]} : vector<9x256xf32> to vector<1x256xf32>
    %138 = vector.broadcast %137 : vector<1x256xf32> to vector<8x256xf32>
    %139 = arith.mulf %136, %138 : vector<8x256xf32>
    %140 = arith.truncf %139 : vector<8x256xf32> to vector<8x256xbf16>
    %c0_41 = arith.constant 0 : index
    %c0_42 = arith.constant 0 : index
    %141 = vector.load %arg7[%c0_41, %c0_42] : memref<72x256xbf16, #tpu.memory_space<vmem>>, vector<8x256xbf16>
    tpu.vector_store %arg7[%c0_41, %c0_42], %140 {strides = array<i32>} : memref<72x256xbf16, #tpu.memory_space<vmem>>, vector<8x256xbf16>,
    %c16_i32_43 = arith.constant 16 : i32
    %142 = tpu.dynamic_rotate %135 by %c16_i32_43 dim 1 : vector<8x256xf32>, i32 -> vector<8x256xf32>
    %143 = vector.extract_strided_slice %1 {offsets = [1, 0], sizes = [1, 256], strides = [1, 1]} : vector<9x256xf32> to vector<1x256xf32>
    %144 = vector.broadcast %143 : vector<1x256xf32> to vector<8x256xf32>
    %145 = arith.mulf %142, %144 : vector<8x256xf32>
    %146 = arith.truncf %145 : vector<8x256xf32> to vector<8x256xbf16>
    %c8_44 = arith.constant 8 : index
    %c0_45 = arith.constant 0 : index
    %147 = vector.load %arg7[%c8_44, %c0_45] : memref<72x256xbf16, #tpu.memory_space<vmem>>, vector<8x256xbf16>
    tpu.vector_store %arg7[%c8_44, %c0_45], %146 {strides = array<i32>} : memref<72x256xbf16, #tpu.memory_space<vmem>>, vector<8x256xbf16>,
    %c15_i32_46 = arith.constant 15 : i32
    %148 = tpu.dynamic_rotate %135 by %c15_i32_46 dim 1 : vector<8x256xf32>, i32 -> vector<8x256xf32>
    %149 = vector.extract_strided_slice %1 {offsets = [2, 0], sizes = [1, 256], strides = [1, 1]} : vector<9x256xf32> to vector<1x256xf32>
    %150 = vector.broadcast %149 : vector<1x256xf32> to vector<8x256xf32>
    %151 = arith.mulf %148, %150 : vector<8x256xf32>
    %152 = arith.truncf %151 : vector<8x256xf32> to vector<8x256xbf16>
    %c16_47 = arith.constant 16 : index
    %c0_48 = arith.constant 0 : index
    %153 = vector.load %arg7[%c16_47, %c0_48] : memref<72x256xbf16, #tpu.memory_space<vmem>>, vector<8x256xbf16>
    tpu.vector_store %arg7[%c16_47, %c0_48], %152 {strides = array<i32>} : memref<72x256xbf16, #tpu.memory_space<vmem>>, vector<8x256xbf16>,
    %c1_i32_49 = arith.constant 1 : i32
    %154 = tpu.dynamic_rotate %135 by %c1_i32_49 dim 1 : vector<8x256xf32>, i32 -> vector<8x256xf32>
    %155 = vector.extract_strided_slice %1 {offsets = [3, 0], sizes = [1, 256], strides = [1, 1]} : vector<9x256xf32> to vector<1x256xf32>
    %156 = vector.broadcast %155 : vector<1x256xf32> to vector<8x256xf32>
    %157 = arith.mulf %154, %156 : vector<8x256xf32>
    %158 = arith.truncf %157 : vector<8x256xf32> to vector<8x256xbf16>
    %c24_50 = arith.constant 24 : index
    %c0_51 = arith.constant 0 : index
    %159 = vector.load %arg7[%c24_50, %c0_51] : memref<72x256xbf16, #tpu.memory_space<vmem>>, vector<8x256xbf16>
    tpu.vector_store %arg7[%c24_50, %c0_51], %158 {strides = array<i32>} : memref<72x256xbf16, #tpu.memory_space<vmem>>, vector<8x256xbf16>,
    %160 = arith.truncf %135 : vector<8x256xf32> to vector<8x256xbf16>
    %c32_52 = arith.constant 32 : index
    %c0_53 = arith.constant 0 : index
    %161 = vector.load %arg7[%c32_52, %c0_53] : memref<72x256xbf16, #tpu.memory_space<vmem>>, vector<8x256xbf16>
    tpu.vector_store %arg7[%c32_52, %c0_53], %160 {strides = array<i32>} : memref<72x256xbf16, #tpu.memory_space<vmem>>, vector<8x256xbf16>,
    %c255_i32_54 = arith.constant 255 : i32
    %162 = tpu.dynamic_rotate %135 by %c255_i32_54 dim 1 : vector<8x256xf32>, i32 -> vector<8x256xf32>
    %163 = vector.extract_strided_slice %1 {offsets = [5, 0], sizes = [1, 256], strides = [1, 1]} : vector<9x256xf32> to vector<1x256xf32>
    %164 = vector.broadcast %163 : vector<1x256xf32> to vector<8x256xf32>
    %165 = arith.mulf %162, %164 : vector<8x256xf32>
    %166 = arith.truncf %165 : vector<8x256xf32> to vector<8x256xbf16>
    %c40_55 = arith.constant 40 : index
    %c0_56 = arith.constant 0 : index
    %167 = vector.load %arg7[%c40_55, %c0_56] : memref<72x256xbf16, #tpu.memory_space<vmem>>, vector<8x256xbf16>
    tpu.vector_store %arg7[%c40_55, %c0_56], %166 {strides = array<i32>} : memref<72x256xbf16, #tpu.memory_space<vmem>>, vector<8x256xbf16>,
    %c241_i32_57 = arith.constant 241 : i32
    %168 = tpu.dynamic_rotate %135 by %c241_i32_57 dim 1 : vector<8x256xf32>, i32 -> vector<8x256xf32>
    %169 = vector.extract_strided_slice %1 {offsets = [6, 0], sizes = [1, 256], strides = [1, 1]} : vector<9x256xf32> to vector<1x256xf32>
    %170 = vector.broadcast %169 : vector<1x256xf32> to vector<8x256xf32>
    %171 = arith.mulf %168, %170 : vector<8x256xf32>
    %172 = arith.truncf %171 : vector<8x256xf32> to vector<8x256xbf16>
    %c48_58 = arith.constant 48 : index
    %c0_59 = arith.constant 0 : index
    %173 = vector.load %arg7[%c48_58, %c0_59] : memref<72x256xbf16, #tpu.memory_space<vmem>>, vector<8x256xbf16>
    tpu.vector_store %arg7[%c48_58, %c0_59], %172 {strides = array<i32>} : memref<72x256xbf16, #tpu.memory_space<vmem>>, vector<8x256xbf16>,
    %c240_i32_60 = arith.constant 240 : i32
    %174 = tpu.dynamic_rotate %135 by %c240_i32_60 dim 1 : vector<8x256xf32>, i32 -> vector<8x256xf32>
    %175 = vector.extract_strided_slice %1 {offsets = [7, 0], sizes = [1, 256], strides = [1, 1]} : vector<9x256xf32> to vector<1x256xf32>
    %176 = vector.broadcast %175 : vector<1x256xf32> to vector<8x256xf32>
    %177 = arith.mulf %174, %176 : vector<8x256xf32>
    %178 = arith.truncf %177 : vector<8x256xf32> to vector<8x256xbf16>
    %c56_61 = arith.constant 56 : index
    %c0_62 = arith.constant 0 : index
    %179 = vector.load %arg7[%c56_61, %c0_62] : memref<72x256xbf16, #tpu.memory_space<vmem>>, vector<8x256xbf16>
    tpu.vector_store %arg7[%c56_61, %c0_62], %178 {strides = array<i32>} : memref<72x256xbf16, #tpu.memory_space<vmem>>, vector<8x256xbf16>,
    %c239_i32_63 = arith.constant 239 : i32
    %180 = tpu.dynamic_rotate %135 by %c239_i32_63 dim 1 : vector<8x256xf32>, i32 -> vector<8x256xf32>
    %181 = vector.extract_strided_slice %1 {offsets = [8, 0], sizes = [1, 256], strides = [1, 1]} : vector<9x256xf32> to vector<1x256xf32>
    %182 = vector.broadcast %181 : vector<1x256xf32> to vector<8x256xf32>
    %183 = arith.mulf %180, %182 : vector<8x256xf32>
    %184 = arith.truncf %183 : vector<8x256xf32> to vector<8x256xbf16>
    %c64_64 = arith.constant 64 : index
    %c0_65 = arith.constant 0 : index
    %185 = vector.load %arg7[%c64_64, %c0_65] : memref<72x256xbf16, #tpu.memory_space<vmem>>, vector<8x256xbf16>
    tpu.vector_store %arg7[%c64_64, %c0_65], %184 {strides = array<i32>} : memref<72x256xbf16, #tpu.memory_space<vmem>>, vector<8x256xbf16>,
    %c0_66 = arith.constant 0 : index
    %c0_67 = arith.constant 0 : index
    %186 = vector.load %arg4[%c0_66, %c0_67] : memref<8x72xbf16, #tpu.memory_space<vmem>>, vector<8x72xbf16>
    %c0_68 = arith.constant 0 : index
    %c0_69 = arith.constant 0 : index
    %187 = vector.load %arg7[%c0_68, %c0_69] : memref<72x256xbf16, #tpu.memory_space<vmem>>, vector<72x256xbf16>
    %cst_70 = arith.constant dense<0.000000e+00> : vector<8x256xf32>
    %188 = tpu.matmul %186, %187, %cst_70 {dimension_numbers = #tpu.dot_dimension_numbers<[1], [0], [0], [1], [0, 0, 1, 1], [], []>} : vector<8x72xbf16>, vector<72x256xbf16>, vector<8x256xf32> -> vector<8x256xf32>
    %cst_71 = arith.constant dense<0.000000e+00> : vector<8xf32>
    %189 = vector.multi_reduction <add>, %188, %cst_71 [1] : vector<8x256xf32> to vector<8xf32>
    %190 = vector.shape_cast %189 : vector<8xf32> to vector<8x1xf32>
    %cst_72 = arith.constant 0.000000e+00 : f32
    %191 = vector.broadcast %cst_72 : f32 to vector<8x1xf32>
    %c0_i32_73 = arith.constant 0 : i32
    %192 = vector.broadcast %c0_i32_73 : i32 to vector<8x1xi32>
    %193 = arith.cmpi sge, %7, %192 : vector<8x1xi32>
    %c4_i32_74 = arith.constant 4 : i32
    %194 = vector.broadcast %c4_i32_74 : i32 to vector<8x1xi32>
    %195 = arith.cmpi slt, %7, %194 : vector<8x1xi32>
    %196 = arith.andi %193, %195 : vector<8x1xi1>
    %cst_75 = arith.constant 0.000000e+00 : f32
    %197 = vector.broadcast %cst_75 : f32 to vector<8x1xf32>
    %198 = arith.select %196, %190, %197 : vector<8x1xi1>, vector<8x1xf32>
    %199 = vector.shape_cast %198 : vector<8x1xf32> to vector<1x8x1xf32>
    %cst_76 = arith.constant dense<0.000000e+00> : vector<1xf32>
    %200 = vector.multi_reduction <add>, %199, %cst_76 [1, 2] : vector<1x8x1xf32> to vector<1xf32>
    %201 = vector.shape_cast %200 : vector<1xf32> to vector<1x1x1xf32>
    %202 = vector.extract %201[0, 0, 0] : f32 from vector<1x1x1xf32>
    %203 = vector.broadcast %202 : f32 to vector<8x1xf32>
    %204 = arith.select %196, %203, %191 : vector<8x1xi1>, vector<8x1xf32>
    %c4_i32_77 = arith.constant 4 : i32
    %205 = vector.broadcast %c4_i32_77 : i32 to vector<8x1xi32>
    %206 = arith.cmpi sge, %7, %205 : vector<8x1xi32>
    %c8_i32_78 = arith.constant 8 : i32
    %207 = vector.broadcast %c8_i32_78 : i32 to vector<8x1xi32>
    %208 = arith.cmpi slt, %7, %207 : vector<8x1xi32>
    %209 = arith.andi %206, %208 : vector<8x1xi1>
    %cst_79 = arith.constant 0.000000e+00 : f32
    %210 = vector.broadcast %cst_79 : f32 to vector<8x1xf32>
    %211 = arith.select %209, %190, %210 : vector<8x1xi1>, vector<8x1xf32>
    %212 = vector.shape_cast %211 : vector<8x1xf32> to vector<1x8x1xf32>
    %cst_80 = arith.constant dense<0.000000e+00> : vector<1xf32>
    %213 = vector.multi_reduction <add>, %212, %cst_80 [1, 2] : vector<1x8x1xf32> to vector<1xf32>
    %214 = vector.shape_cast %213 : vector<1xf32> to vector<1x1x1xf32>
    %215 = vector.extract %214[0, 0, 0] : f32 from vector<1x1x1xf32>
    %216 = vector.broadcast %215 : f32 to vector<8x1xf32>
    %217 = arith.select %209, %216, %204 : vector<8x1xi1>, vector<8x1xf32>
    %cst_81 = arith.constant 9.765625E-4 : f32
    %218 = vector.broadcast %cst_81 : f32 to vector<8x1xf32>
    %219 = arith.mulf %217, %218 : vector<8x1xf32>
    %220 = vector.broadcast %219 : vector<8x1xf32> to vector<8x256xf32>
    %221 = arith.subf %188, %220 : vector<8x256xf32>
    %222 = arith.mulf %221, %221 : vector<8x256xf32>
    %cst_82 = arith.constant dense<0.000000e+00> : vector<8xf32>
    %223 = vector.multi_reduction <add>, %222, %cst_82 [1] : vector<8x256xf32> to vector<8xf32>
    %224 = vector.shape_cast %223 : vector<8xf32> to vector<8x1xf32>
    %cst_83 = arith.constant 0.000000e+00 : f32
    %225 = vector.broadcast %cst_83 : f32 to vector<8x1xf32>
    %c0_i32_84 = arith.constant 0 : i32
    %226 = vector.broadcast %c0_i32_84 : i32 to vector<8x1xi32>
    %227 = arith.cmpi sge, %7, %226 : vector<8x1xi32>
    %c4_i32_85 = arith.constant 4 : i32
    %228 = vector.broadcast %c4_i32_85 : i32 to vector<8x1xi32>
    %229 = arith.cmpi slt, %7, %228 : vector<8x1xi32>
    %230 = arith.andi %227, %229 : vector<8x1xi1>
    %cst_86 = arith.constant 0.000000e+00 : f32
    %231 = vector.broadcast %cst_86 : f32 to vector<8x1xf32>
    %232 = arith.select %230, %224, %231 : vector<8x1xi1>, vector<8x1xf32>
    %233 = vector.shape_cast %232 : vector<8x1xf32> to vector<1x8x1xf32>
    %cst_87 = arith.constant dense<0.000000e+00> : vector<1xf32>
    %234 = vector.multi_reduction <add>, %233, %cst_87 [1, 2] : vector<1x8x1xf32> to vector<1xf32>
    %235 = vector.shape_cast %234 : vector<1xf32> to vector<1x1x1xf32>
    %236 = vector.extract %235[0, 0, 0] : f32 from vector<1x1x1xf32>
    %237 = vector.broadcast %236 : f32 to vector<8x1xf32>
    %238 = arith.select %230, %237, %225 : vector<8x1xi1>, vector<8x1xf32>
    %c4_i32_88 = arith.constant 4 : i32
    %239 = vector.broadcast %c4_i32_88 : i32 to vector<8x1xi32>
    %240 = arith.cmpi sge, %7, %239 : vector<8x1xi32>
    %c8_i32_89 = arith.constant 8 : i32
    %241 = vector.broadcast %c8_i32_89 : i32 to vector<8x1xi32>
    %242 = arith.cmpi slt, %7, %241 : vector<8x1xi32>
    %243 = arith.andi %240, %242 : vector<8x1xi1>
    %cst_90 = arith.constant 0.000000e+00 : f32
    %244 = vector.broadcast %cst_90 : f32 to vector<8x1xf32>
    %245 = arith.select %243, %224, %244 : vector<8x1xi1>, vector<8x1xf32>
    %246 = vector.shape_cast %245 : vector<8x1xf32> to vector<1x8x1xf32>
    %cst_91 = arith.constant dense<0.000000e+00> : vector<1xf32>
    %247 = vector.multi_reduction <add>, %246, %cst_91 [1, 2] : vector<1x8x1xf32> to vector<1xf32>
    %248 = vector.shape_cast %247 : vector<1xf32> to vector<1x1x1xf32>
    %249 = vector.extract %248[0, 0, 0] : f32 from vector<1x1x1xf32>
    %250 = vector.broadcast %249 : f32 to vector<8x1xf32>
    %251 = arith.select %243, %250, %238 : vector<8x1xi1>, vector<8x1xf32>
    %cst_92 = arith.constant 9.765625E-4 : f32
    %252 = vector.broadcast %cst_92 : f32 to vector<8x1xf32>
    %253 = arith.mulf %251, %252 : vector<8x1xf32>
    %cst_93 = arith.constant 9.99999974E-6 : f32
    %254 = vector.broadcast %cst_93 : f32 to vector<8x1xf32>
    %255 = arith.addf %253, %254 : vector<8x1xf32>
    %256 = math.rsqrt %255 : vector<8x1xf32>
    %257 = arith.mulf %5, %256 : vector<8x1xf32>
    %258 = vector.broadcast %257 : vector<8x1xf32> to vector<8x256xf32>
    %259 = arith.mulf %221, %258 : vector<8x256xf32>
    %260 = vector.broadcast %6 : vector<8x1xf32> to vector<8x256xf32>
    %261 = arith.addf %259, %260 : vector<8x256xf32>
    %262 = arith.addf %261, %0 : vector<8x256xf32>
    %cst_94 = arith.constant 0.000000e+00 : f32
    %263 = vector.broadcast %cst_94 : f32 to vector<8x256xf32>
    %264 = arith.maximumf %262, %263 : vector<8x256xf32>
    %c0_95 = arith.constant 0 : index
    %c0_96 = arith.constant 0 : index
    %265 = vector.load %arg6[%c0_95, %c0_96] : memref<8x256xf32, #tpu.memory_space<vmem>>, vector<8x256xf32>
    tpu.vector_store %arg6[%c0_95, %c0_96], %264 {strides = array<i32>} : memref<8x256xf32, #tpu.memory_space<vmem>>, vector<8x256xf32>,
    return
  }
  func.func @transform_0(%arg0: i32) -> (i32, i32) {
    %c0_i32 = arith.constant 0 : i32
    %c0_i32_0 = arith.constant 0 : i32
    return %c0_i32, %arg0 : i32, i32
  }
  func.func @transform_1(%arg0: i32) -> (i32, i32) {
    %c0_i32 = arith.constant 0 : i32
    %c0_i32_0 = arith.constant 0 : i32
    %c0_i32_1 = arith.constant 0 : i32
    return %c0_i32, %c0_i32_0 : i32, i32
  }
  func.func @transform_2(%arg0: i32) -> (i32, i32) {
    %c0_i32 = arith.constant 0 : i32
    %c0_i32_0 = arith.constant 0 : i32
    %c0_i32_1 = arith.constant 0 : i32
    return %c0_i32, %c0_i32_0 : i32, i32
  }
  func.func @transform_3(%arg0: i32) -> (i32, i32) {
    %c0_i32 = arith.constant 0 : i32
    %c0_i32_0 = arith.constant 0 : i32
    %c0_i32_1 = arith.constant 0 : i32
    return %c0_i32, %c0_i32_0 : i32, i32
  }
  func.func @transform_4(%arg0: i32) -> (i32, i32) {
    %c0_i32 = arith.constant 0 : i32
    %c0_i32_0 = arith.constant 0 : i32
    %c0_i32_1 = arith.constant 0 : i32
    return %c0_i32, %c0_i32_0 : i32, i32
  }
  func.func @transform_5(%arg0: i32) -> (i32, i32) {
    %c0_i32 = arith.constant 0 : i32
    %c0_i32_0 = arith.constant 0 : i32
    return %c0_i32, %arg0 : i32, i32
  }
}

</mosaic_0001>

<llo_original>
// kernel: tpu_custom_call.1
$region0: #{tpu_custom_call.1}
  #allocation0 [shape = 'u32[]', space=smem, size = 0x4, offset = 0x4, fixed_abs, tag = 'smem constant byte address 0x4 - core index']
  #allocation1 [shape = 'u32[72,128]{1,0:T(1,128)}', space=vmem, size = 0x9000, scoped, tag = 'internal scratch']
  #allocation2 [shape = 'bf16[72,256]{1,0:T(8,128)(2,1)}', space=vmem, size = 0x9000, scoped, tag = 'scratch operand']
  %s0 = inlined_call_operand.hbm [shape: f32[8,512], index: 0, kind: input, shape index: {}]
  %s1 = inlined_call_operand.hbm [shape: f32[9,256], index: 1, kind: input, shape index: {}]
  %s2 = inlined_call_operand.vmem [shape: bf16[8,72], index: 2, kind: input, shape index: {}]
  %s3 = inlined_call_operand.vmem [shape: bf16[8,72], index: 3, kind: input, shape index: {}]
  %s4 = inlined_call_operand.vmem [shape: f32[8,4], index: 4, kind: input, shape index: {}]
  %s5 = inlined_call_operand.hbm [shape: f32[8,512], index: 5, kind: output, shape index: {}]
  %s6 = sld [smem:[#allocation0]]
  $region61: #{tpu_custom_call.1} parent=0
    _
  %s8 = ssub.s32 1, %s6
  %s9 = scalar_select 0, %s8, %s6
  $region1: #{tpu_custom_call.1} parent=0
    #allocation3 [shape = 'u8[16384]{0}', space=vmem, size = 0x4000, scoped, tag = 'input window, operand 0']
    #allocation4 [shape = 's32[2]{0}', space=sflag, size = 0x8, scoped, tag = 'scoped memory for tpu_custom_call.1']
    #allocation5 [shape = 's32[2]{0}', space=sflag, size = 0x8, scoped, tag = 'scoped memory for tpu_custom_call.1']
    #allocation6 [shape = 'u8[16384]{0}', space=vmem, size = 0x4000, scoped, tag = 'input window, operand 1, single buffered']
    #allocation7 [shape = 's32[1]{0}', space=sflag, size = 0x4, scoped, tag = 'scoped memory for tpu_custom_call.1']
    #allocation8 [shape = 'u8[16384]{0}', space=vmem, size = 0x4000, scoped, tag = 'output window, operand 0']
    %10 = vsyncpa [#allocation4], 0
    %s11 = scalar_lea.sflag [#allocation4], 1
    %12 = vsyncpa %s11, 0
    %13 = vsyncpa [#allocation7], 0
    %14 = vsyncpa [#allocation5], 0
    %s15 = scalar_lea.sflag [#allocation5], 1
    %16 = vsyncpa %s15, 0
    loop: start=0, step=1, limit=4
    $region2: #{tpu_custom_call.1} parent=1 // loop_pre_header
      _
    $region3: #{tpu_custom_call.1} parent=1 // loop_header
      %s18 = sphi 0, %s22
      %p19 = scmp.ge.s32.totalorder %s18, 4
      %s28 = sphi 0, %s30
      %s31 = sphi 0, %s28
      %s32 = sphi 0, %s31
      %s48 = sphi 0, %s32
      %s52 = sphi 0, %s52
      %s54 = sphi 0, %s52
      %s55 = sphi 0, %s54
      %s69 = sphi 0, %s55
      %s73 = sphi 0, %s73
      %s75 = sphi 0, %s73
      %s76 = sphi 0, %s75
      %s90 = sphi 0, %s76
      %s94 = sphi 0, %s94
      %s96 = sphi 0, %s94
      %s97 = sphi 0, %s96
      %s111 = sphi 0, %s97
      %s115 = sphi 0, %s115
      %s117 = sphi 0, %s115
      %s118 = sphi 0, %s117
      %s132 = sphi 0, %s118
      %s138 = sphi 0, %s140
      %s141 = sphi 0, %s138
      %s142 = sphi 0, %s141
      %s158 = sphi 0, %s142
    $region4: #{tpu_custom_call.1} parent=1 // loop_header_branch
      %21 = sbr.rel (%p19) target = $region8
    $region5: #{tpu_custom_call.1} parent=1 // loop_body
      %s23 = ssub.s32 %s18, 1
      %s24 = ssub.s32 %s18, 2
      %s25 = sadd.s32 %s18, 1
      %s26 = ssub.s32 %s18, %s25
      %p27 = scmp.eq.s32.totalorder %s26, 0
      %s29 = sadd.s32 %s28, 1
      %s30 = scalar_select %p27, %s28, %s29
      %p33 = pneg %p27
      %p34 = scmp.eq.s32.totalorder %s18, 1
      %p35 = por %p33, %p34
      %p36 = scmp.ne.s32.totalorder %s28, %s31
      %p37 = scmp.eq.s32.totalorder %s18, 0
      %p38 = por %p36, %p37
      %p39 = scmp.ne.s32.totalorder %s28, %s31
      %p40 = scmp.eq.s32.totalorder %s23, 1
      %p41 = por %p39, %p40
      %p42 = scmp.ne.s32.totalorder %s31, %s32
      %p43 = scmp.eq.s32.totalorder %s23, 0
      %p44 = por %p42, %p43
      %p45 = scmp.ne.s32.totalorder %s31, %s32
      %p46 = scmp.eq.s32.totalorder %s24, 1
      %p47 = por %p45, %p46
      %p49 = scmp.ne.s32.totalorder %s32, %s48
      %p50 = scmp.eq.s32.totalorder %s24, 0
      %p51 = por %p49, %p50
      %s53 = sadd.s32 %s52, 1
      %p56 = scmp.eq.s32.totalorder %s18, 1
      %p57 = scmp.ne.s32.totalorder %s52, %s54
      %p58 = scmp.eq.s32.totalorder %s18, 0
      %p59 = por %p57, %p58
      %p60 = scmp.ne.s32.totalorder %s52, %s54
      %p61 = scmp.eq.s32.totalorder %s23, 1
      %p62 = por %p60, %p61
      %p63 = scmp.ne.s32.totalorder %s54, %s55
      %p64 = scmp.eq.s32.totalorder %s23, 0
      %p65 = por %p63, %p64
      %p66 = scmp.ne.s32.totalorder %s54, %s55
      %p67 = scmp.eq.s32.totalorder %s24, 1
      %p68 = por %p66, %p67
      %p70 = scmp.ne.s32.totalorder %s55, %s69
      %p71 = scmp.eq.s32.totalorder %s24, 0
      %p72 = por %p70, %p71
      %s74 = sadd.s32 %s73, 1
      %p77 = scmp.eq.s32.totalorder %s18, 1
      %p78 = scmp.ne.s32.totalorder %s73, %s75
      %p79 = scmp.eq.s32.totalorder %s18, 0
      %p80 = por %p78, %p79
      %p81 = scmp.ne.s32.totalorder %s73, %s75
      %p82 = scmp.eq.s32.totalorder %s23, 1
      %p83 = por %p81, %p82
      %p84 = scmp.ne.s32.totalorder %s75, %s76
      %p85 = scmp.eq.s32.totalorder %s23, 0
      %p86 = por %p84, %p85
      %p87 = scmp.ne.s32.totalorder %s75, %s76
      %p88 = scmp.eq.s32.totalorder %s24, 1
      %p89 = por %p87, %p88
      %p91 = scmp.ne.s32.totalorder %s76, %s90
      %p92 = scmp.eq.s32.totalorder %s24, 0
      %p93 = por %p91, %p92
      %s95 = sadd.s32 %s94, 1
      %p98 = scmp.eq.s32.totalorder %s18, 1
      %p99 = scmp.ne.s32.totalorder %s94, %s96
      %p100 = scmp.eq.s32.totalorder %s18, 0
      %p101 = por %p99, %p100
      %p102 = scmp.ne.s32.totalorder %s94, %s96
      %p103 = scmp.eq.s32.totalorder %s23, 1
      %p104 = por %p102, %p103
      %p105 = scmp.ne.s32.totalorder %s96, %s97
      %p106 = scmp.eq.s32.totalorder %s23, 0
      %p107 = por %p105, %p106
      %p108 = scmp.ne.s32.totalorder %s96, %s97
      %p109 = scmp.eq.s32.totalorder %s24, 1
      %p110 = por %p108, %p109
      %p112 = scmp.ne.s32.totalorder %s97, %s111
      %p113 = scmp.eq.s32.totalorder %s24, 0
      %p114 = por %p112, %p113
      %s116 = sadd.s32 %s115, 1
      %p119 = scmp.eq.s32.totalorder %s18, 1
      %p120 = scmp.ne.s32.totalorder %s115, %s117
      %p121 = scmp.eq.s32.totalorder %s18, 0
      %p122 = por %p120, %p121
      %p123 = scmp.ne.s32.totalorder %s115, %s117
      %p124 = scmp.eq.s32.totalorder %s23, 1
      %p125 = por %p123, %p124
      %p126 = scmp.ne.s32.totalorder %s117, %s118
      %p127 = scmp.eq.s32.totalorder %s23, 0
      %p128 = por %p126, %p127
      %p129 = scmp.ne.s32.totalorder %s117, %s118
      %p130 = scmp.eq.s32.totalorder %s24, 1
      %p131 = por %p129, %p130
      %p133 = scmp.ne.s32.totalorder %s118, %s132
      %p134 = scmp.eq.s32.totalorder %s24, 0
      %p135 = por %p133, %p134
      %s136 = ssub.s32 %s18, %s25
      %p137 = scmp.eq.s32.totalorder %s136, 0
      %s139 = sadd.s32 %s138, 1
      %s140 = scalar_select %p137, %s138, %s139
      %p143 = pneg %p137
      %p144 = scmp.eq.s32.totalorder %s18, 1
      %p145 = por %p143, %p144
      %p146 = scmp.ne.s32.totalorder %s138, %s141
      %p147 = scmp.eq.s32.totalorder %s18, 0
      %p148 = por %p146, %p147
      %p149 = scmp.ne.s32.totalorder %s138, %s141
      %p150 = scmp.eq.s32.totalorder %s23, 1
      %p151 = por %p149, %p150
      %p152 = scmp.ne.s32.totalorder %s141, %s142
      %p153 = scmp.eq.s32.totalorder %s23, 0
      %p154 = por %p152, %p153
      %p155 = scmp.ne.s32.totalorder %s141, %s142
      %p156 = scmp.eq.s32.totalorder %s24, 1
      %p157 = por %p155, %p156
      %p159 = scmp.ne.s32.totalorder %s142, %s158
      %p160 = scmp.eq.s32.totalorder %s24, 0
      %p161 = por %p159, %p160
      %p162 = scmp.le.s32.totalorder 1, %s18
      %p163 = scmp.lt.s32.totalorder %s18, 3
      %p164 = pnand %p162, %p163
      %p165 = pneg %p164
      // Predicated region
      $region9: #{tpu_custom_call.1} parent=5 // pred_check
        _
      $region10: #{tpu_custom_call.1} parent=5 // pred_check_branch
        %167 = sbr.rel (%p164) target = $region12
      $region11: #{tpu_custom_call.1} parent=5 // pred_region
        %s168 = ssub.s32 %s18, 1
        // Predicated region
        $region13: #{tpu_custom_call.1} parent=11 // pred_check
          %p169 = pneg %p65
        $region14: #{tpu_custom_call.1} parent=11 // pred_check_branch
          %171 = sbr.rel (%p169) target = $region16
        $region15: #{tpu_custom_call.1} parent=11 // pred_region
          %173 = vsyncadd [#allocation7], 0
          %s174 = sshll.u32 %s1, 4
          %s175 = int_to_ptr.hbm [resolvable:$true] %s174
          %s176 = sshll.u32 [#allocation6], 4
          %s177 = int_to_ptr.vmem [resolvable:$true] %s176
          %182 = dma.hbm_to_vmem [thread:$0]  %s175, 512, %s177, [#allocation7], 256, 256, 16
        $region16: #{tpu_custom_call.1} parent=11 // pred_fallthru
          _
        // Predicated region
        $region17: #{tpu_custom_call.1} parent=11 // pred_check
          %p183 = pneg %p86
        $region18: #{tpu_custom_call.1} parent=11 // pred_check_branch
          %185 = sbr.rel (%p183) target = $region20
        $region19: #{tpu_custom_call.1} parent=11 // pred_region
          _
        $region20: #{tpu_custom_call.1} parent=11 // pred_fallthru
          _
        // Predicated region
        $region21: #{tpu_custom_call.1} parent=11 // pred_check
          %p186 = pneg %p107
        $region22: #{tpu_custom_call.1} parent=11 // pred_check_branch
          %188 = sbr.rel (%p186) target = $region24
        $region23: #{tpu_custom_call.1} parent=11 // pred_region
          _
        $region24: #{tpu_custom_call.1} parent=11 // pred_fallthru
          _
        // Predicated region
        $region25: #{tpu_custom_call.1} parent=11 // pred_check
          %p189 = pneg %p128
        $region26: #{tpu_custom_call.1} parent=11 // pred_check_branch
          %191 = sbr.rel (%p189) target = $region28
        $region27: #{tpu_custom_call.1} parent=11 // pred_region
          _
        $region28: #{tpu_custom_call.1} parent=11 // pred_fallthru
          _
      $region12: #{tpu_custom_call.1} parent=5 // pred_fallthru
        _
      %p192 = scmp.lt.s32.totalorder %s18, 2
      // Predicated region
      $region29: #{tpu_custom_call.1} parent=5 // pred_check
        %p193 = pneg %p192
      $region30: #{tpu_custom_call.1} parent=5 // pred_check_branch
        %195 = sbr.rel (%p193) target = $region32
      $region31: #{tpu_custom_call.1} parent=5 // pred_region
        // Predicated region
        $region33: #{tpu_custom_call.1} parent=31 // pred_check
          %p196 = pneg %p38
        $region34: #{tpu_custom_call.1} parent=31 // pred_check_branch
          %198 = sbr.rel (%p196) target = $region36
        $region35: #{tpu_custom_call.1} parent=31 // pred_region
          %s199 = sand.u32 %s28, 1
          %s200 = scalar_lea.sflag [#allocation4], %s199
          %s201 = sand.u32 %s28, 1
          %s202 = smul.addr %s201, 16
          %s203 = scalar_lea.vmem [#allocation3], %s202
          %s204 = smul.u32 2, %s18
          %206 = vsyncadd %s200, 0
          %s207 = smul.addr %s204, 8
          %s208 = scalar_lea.hbm %s0, %s207
          %s210 = sshll.u32 %s208, 4
          %s211 = int_to_ptr.hbm [resolvable:$true] %s210
          %s212 = sshll.u32 %s203, 4
          %s213 = int_to_ptr.vmem [resolvable:$true] %s212
          %215 = dma.hbm_to_vmem [thread:$0]  %s211, 256, %s213, %s200
        $region36: #{tpu_custom_call.1} parent=31 // pred_fallthru
          _
      $region32: #{tpu_custom_call.1} parent=5 // pred_fallthru
        _
      %p216 = scmp.le.s32.totalorder 1, %s18
      %p217 = scmp.lt.s32.totalorder %s18, 3
      %p218 = pnand %p216, %p217
      %p219 = pneg %p218
      // Predicated region
      $region37: #{tpu_custom_call.1} parent=5 // pred_check
        _
      $region38: #{tpu_custom_call.1} parent=5 // pred_check_branch
        %221 = sbr.rel (%p218) target = $region40
      $region39: #{tpu_custom_call.1} parent=5 // pred_region
        %s222 = ssub.s32 %s18, 1
        %s223 = sand.u32 %s31, 1
        %s224 = scalar_lea.sflag [#allocation4], %s223
        %s225 = sand.u32 %s31, 1
        %s226 = smul.addr %s225, 16
        %s227 = scalar_lea.vmem [#allocation3], %s226
        // Predicated region
        $region41: #{tpu_custom_call.1} parent=39 // pred_check
          %p228 = pneg %p44
        $region42: #{tpu_custom_call.1} parent=39 // pred_check_branch
          %230 = sbr.rel (%p228) target = $region44
        $region43: #{tpu_custom_call.1} parent=39 // pred_region
          %232 = dma.done %s224, 256
        $region44: #{tpu_custom_call.1} parent=39 // pred_fallthru
          _
        // Predicated region
        $region45: #{tpu_custom_call.1} parent=39 // pred_check
          %p233 = pneg %p65
        $region46: #{tpu_custom_call.1} parent=39 // pred_check_branch
          %235 = sbr.rel (%p233) target = $region48
        $region47: #{tpu_custom_call.1} parent=39 // pred_region
          %237 = dma.done [#allocation7], 512
        $region48: #{tpu_custom_call.1} parent=39 // pred_fallthru
          _
        %s238 = sand.u32 %s31, 1
        %s239 = scalar_lea.sflag [#allocation4], %s238
        %s240 = sand.u32 %s31, 1
        %s241 = smul.addr %s240, 16
        %s242 = scalar_lea.vmem [#allocation3], %s241
        %p243 = pneg %p44
        %p244 = pneg %p41
        %p245 = pneg %p65
        %p246 = pneg %p62
        %p247 = pneg %p86
        %p248 = pneg %p83
        %p249 = pneg %p107
        %p250 = pneg %p104
        %p251 = pneg %p128
        %p252 = pneg %p125
        %p253 = pneg %p154
        %p254 = pneg %p151
        %s255 = sand.u32 %s141, 1
        %s256 = scalar_lea.sflag [#allocation5], %s255
        %s257 = sand.u32 %s141, 1
        %s258 = smul.addr %s257, 16
        %s259 = scalar_lea.vmem [#allocation8], %s258
        %s260 = smul.u32 2, %s23
        %s261 = smul.u32 2, %s23
        %v263 = vld [vmem:[%s227] sm:$0xff]
        %v264 = vld [vmem:[%s227 + $0x8] sm:$0xff]
        %v265 = vld [vmem:[#allocation6] sm:$0xff]
        %v266 = vld [vmem:[#allocation6 + $0x8] sm:$0xff]
        %v267 = vld [vmem:[#allocation6 + $0x10] sm:$0x1]
        %v268 = vld [vmem:[#allocation6 + $0x18] sm:$0x1]
        %v269 = vld [vmem:[%s4] sm:$0xff]
        %v270 = vlaneseq
        %v271 = vshrl.u32 %v270, 7
        %272 = vrot.lane.b32.xlu0 %v263, 17
        %v273 = vpop.permute.xlu0 %272
        %274 = vrot.lane.b32.xlu0 %v264, 17
        %v275 = vpop.permute.xlu0 %274
        %v276 = vlaneseq
        %v277 = vand.u32 %v276, 127
        %vm278 = vcmp.lt.s32.totalorder %v277, 17
        %v279 = vsel %vm278, %v273, %v275
        %v280 = vsel %vm278, %v275, %v273
        %v281 = vperm.slane %v265, 0
        %v282 = vperm.slane %v266, 0
        %v283 = vmul.f32 %v280, %v281
        %v284 = vmul.f32 %v279, %v282
        %v285 = vpack.c.bf16 %v284, %v283
        %286 = vst [vmem:[#allocation2] sm:$0xff] %v285
        %287 = vrot.lane.b32.xlu0 %v263, 16
        %v288 = vpop.permute.xlu0 %287
        %289 = vrot.lane.b32.xlu0 %v264, 16
        %v290 = vpop.permute.xlu0 %289
        %vm291 = vcmp.lt.s32.totalorder %v277, 16
        %v292 = vsel %vm291, %v288, %v290
        %v293 = vsel %vm291, %v290, %v288
        %v294 = vperm.slane %v265, 1
        %v295 = vperm.slane %v266, 1
        %v296 = vmul.f32 %v293, %v294
        %v297 = vmul.f32 %v292, %v295
        %v298 = vpack.c.bf16 %v297, %v296
        %299 = vst [vmem:[#allocation2 + $0x8] sm:$0xff] %v298
        %300 = vrot.lane.b32.xlu0 %v263, 15
        %v301 = vpop.permute.xlu0 %300
        %302 = vrot.lane.b32.xlu0 %v264, 15
        %v303 = vpop.permute.xlu0 %302
        %vm304 = vcmp.lt.s32.totalorder %v277, 15
        %v305 = vsel %vm304, %v301, %v303
        %v306 = vsel %vm304, %v303, %v301
        %v307 = vperm.slane %v265, 2
        %v308 = vperm.slane %v266, 2
        %v309 = vmul.f32 %v306, %v307
        %v310 = vmul.f32 %v305, %v308
        %v311 = vpack.c.bf16 %v310, %v309
        %312 = vst [vmem:[#allocation2 + $0x10] sm:$0xff] %v311
        %313 = vrot.lane.b32.xlu0 %v263, 1
        %v314 = vpop.permute.xlu0 %313
        %315 = vrot.lane.b32.xlu0 %v264, 1
        %v316 = vpop.permute.xlu0 %315
        %vm317 = vcmp.lt.s32.totalorder %v277, 1
        %v318 = vsel %vm317, %v314, %v316
        %v319 = vsel %vm317, %v316, %v314
        %v320 = vperm.slane %v265, 3
        %v321 = vperm.slane %v266, 3
        %v322 = vmul.f32 %v319, %v320
        %v323 = vmul.f32 %v318, %v321
        %v324 = vpack.c.bf16 %v323, %v322
        %325 = vst [vmem:[#allocation2 + $0x18] sm:$0xff] %v324
        %v326 = vpack.c.bf16 %v264, %v263
        %327 = vst [vmem:[#allocation2 + $0x20] sm:$0xff] %v326
        %328 = vrot.lane.b32.xlu0 %v263, 127
        %v329 = vpop.permute.xlu0 %328
        %330 = vrot.lane.b32.xlu0 %v264, 127
        %v331 = vpop.permute.xlu0 %330
        %vm332 = vcmp.lt.s32.totalorder %v277, 127
        %v333 = vsel %vm332, %v329, %v331
        %v334 = vsel %vm332, %v331, %v329
        %v335 = vperm.slane %v265, 5
        %v336 = vperm.slane %v266, 5
        %v337 = vmul.f32 %v333, %v335
        %v338 = vmul.f32 %v334, %v336
        %v339 = vpack.c.bf16 %v338, %v337
        %340 = vst [vmem:[#allocation2 + $0x28] sm:$0xff] %v339
        %341 = vrot.lane.b32.xlu0 %v263, 113
        %v342 = vpop.permute.xlu0 %341
        %343 = vrot.lane.b32.xlu0 %v264, 113
        %v344 = vpop.permute.xlu0 %343
        %vm345 = vcmp.lt.s32.totalorder %v277, 113
        %v346 = vsel %vm345, %v342, %v344
        %v347 = vsel %vm345, %v344, %v342
        %v348 = vperm.slane %v265, 6
        %v349 = vperm.slane %v266, 6
        %v350 = vmul.f32 %v346, %v348
        %v351 = vmul.f32 %v347, %v349
        %v352 = vpack.c.bf16 %v351, %v350
        %353 = vst [vmem:[#allocation2 + $0x30] sm:$0xff] %v352
        %354 = vrot.lane.b32.xlu0 %v263, 112
        %v355 = vpop.permute.xlu0 %354
        %356 = vrot.lane.b32.xlu0 %v264, 112
        %v357 = vpop.permute.xlu0 %356
        %vm358 = vcmp.lt.s32.totalorder %v277, 112
        %v359 = vsel %vm358, %v355, %v357
        %v360 = vsel %vm358, %v357, %v355
        %v361 = vperm.slane %v265, 7
        %v362 = vperm.slane %v266, 7
        %v363 = vmul.f32 %v359, %v361
        %v364 = vmul.f32 %v360, %v362
        %v365 = vpack.c.bf16 %v364, %v363
        %366 = vst [vmem:[#allocation2 + $0x38] sm:$0xff] %v365
        %367 = vrot.lane.b32.xlu0 %v263, 111
        %v368 = vpop.permute.xlu0 %367
        %369 = vrot.lane.b32.xlu0 %v264, 111
        %v370 = vpop.permute.xlu0 %369
        %vm371 = vcmp.lt.s32.totalorder %v277, 111
        %v372 = vsel %vm371, %v368, %v370
        %v373 = vsel %vm371, %v370, %v368
        %v374 = vperm.slane %v267, 0
        %v375 = vperm.slane %v268, 0
        %v376 = vmul.f32 %v372, %v374
        %v377 = vmul.f32 %v373, %v375
        %v378 = vpack.c.bf16 %v377, %v376
        %379 = vst [vmem:[#allocation2 + $0x40] sm:$0xff] %v378
        %v380 = vld [vmem:[%s2] sm:$0xf]
        %v381 = vld [vmem:[#allocation2] sm:$0xff]
        %v382 = vld [vmem:[#allocation2 + $0x8] sm:$0xff]
        %v383 = vld [vmem:[#allocation2 + $0x10] sm:$0xff]
        %v384 = vld [vmem:[#allocation2 + $0x18] sm:$0xff]
        %v385 = vld [vmem:[#allocation2 + $0x20] sm:$0xff]
        %v386 = vld [vmem:[#allocation2 + $0x28] sm:$0xff]
        %v387 = vld [vmem:[#allocation2 + $0x30] sm:$0xff]
        %v388 = vld [vmem:[#allocation2 + $0x38] sm:$0xff]
        %v389 = vld [vmem:[#allocation2 + $0x40] sm:$0xff]
        %v399 = vunpack.c.l.b16 %v381
        %v400 = vunpack.c.h.b16 %v381
        %v401 = vunpack.c.l.b16 %v382
        %v402 = vunpack.c.h.b16 %v382
        %v403 = vunpack.c.l.b16 %v383
        %v404 = vunpack.c.h.b16 %v383
        %v405 = vunpack.c.l.b16 %v384
        %v406 = vunpack.c.h.b16 %v384
        %v407 = vunpack.c.l.b16 %v385
        %v408 = vunpack.c.h.b16 %v385
        %v409 = vunpack.c.l.b16 %v386
        %v410 = vunpack.c.h.b16 %v386
        %v411 = vunpack.c.l.b16 %v387
        %v412 = vunpack.c.h.b16 %v387
        %v413 = vunpack.c.l.b16 %v388
        %v414 = vunpack.c.h.b16 %v388
        %v415 = vunpack.c.l.b16 %v389
        %v416 = vunpack.c.h.b16 %v389
        %v417 = vpack.c.b16 %v401, %v399
        %v418 = vpack.c.b16 %v402, %v400
        %v419 = vpack.c.b16 %v405, %v403
        %v420 = vpack.c.b16 %v406, %v404
        %v421 = vpack.c.b16 %v409, %v407
        %v422 = vpack.c.b16 %v410, %v408
        %v423 = vpack.c.b16 %v413, %v411
        %v424 = vpack.c.b16 %v414, %v412
        %v425 = vpack.c.b16 %v415, %v415
        %v426 = vpack.c.b16 %v416, %v416
        %vm435 = vcmask 588800
        %v437 = vsel %vm435, %v380, 0
        %vm439 = vcmask 1043456
        %v441 = vsel %vm439, %v425, 0
        %v444 = vsel %vm439, %v426, 0
        %446 = vmatpush.bf16.msra.mxu0 0
        %447 = vmatpush.bf16.msra.mxu0 0
        %448 = vmatpush.bf16.msra.mxu0 0
        %449 = vmatpush.bf16.msra.mxu0 %v441
        %450 = vmatpush.bf16.msra.mxu0 %v423
        %451 = vmatpush.bf16.msra.mxu0 %v421
        %452 = vmatpush.bf16.msra.mxu0 %v419
        %453 = vmatpush.bf16.msra.mxu0 %v417
        %454 = vmatmul.bf16.gmra.mxu0 %v437
        %v455 = vpop.f32.mrf.mxu0
        %v456 = vadd.f32 0.0, %v455
        %v457 = vpop.f32.mrf.mxu0
        %458 = vdwg.mxu0
        %459 = vmatpush.bf16.msra.mxu0 0
        %460 = vmatpush.bf16.msra.mxu0 0
        %461 = vmatpush.bf16.msra.mxu0 0
        %462 = vmatpush.bf16.msra.mxu0 %v444
        %463 = vmatpush.bf16.msra.mxu0 %v424
        %464 = vmatpush.bf16.msra.mxu0 %v422
        %465 = vmatpush.bf16.msra.mxu0 %v420
        %466 = vmatpush.bf16.msra.mxu0 %v418
        %467 = vmatmul.bf16.gmra.mxu0 %v437
        %v468 = vpop.f32.mrf.mxu0
        %v469 = vadd.f32 0.0, %v468
        %v470 = vpop.f32.mrf.mxu0
        %471 = vdwg.mxu0
        %v472 = vadd.f32 %v456, %v469
        %473 = vadd.xlane.f32.xlu0 %v472
        %v474 = vpop.xlane.xlu0 %473
        %vm475 = vcmp.ge.s32.totalorder %v271, 0
        %vm476 = vcmp.lt.s32.totalorder %v271, 4
        %vm477 = vmand %vm475, %vm476
        %v478 = vsel %vm477, %v474, 0.0
        %vm479 = vcmask 7168
        %v480 = vsel %vm479, %v478, 0.0
        %481 = vadd.xlane.f32.xlu0 %v480
        %v482 = vpop.xlane.xlu0 %481
        %v483 = vrot.slane %v482, 4
        %v484 = vadd.f32 %v482, %v483
        %v485 = vrot.slane %v484, 2
        %v486 = vadd.f32 %v484, %v485
        %v487 = vrot.slane %v486, 1
        %v488 = vadd.f32 %v486, %v487
        %s489 = vtos %v488
        %v490 = vstv %s489
        %v491 = vsel %vm477, %v490, 0.0
        %vm492 = vcmp.ge.s32.totalorder %v271, 4
        %vm493 = vcmp.lt.s32.totalorder %v271, 8
        %vm494 = vmand %vm492, %vm493
        %v495 = vsel %vm494, %v474, 0.0
        %v496 = vsel %vm479, %v495, 0.0
        %497 = vadd.xlane.f32.xlu0 %v496
        %v498 = vpop.xlane.xlu0 %497
        %v499 = vrot.slane %v498, 4
        %v500 = vadd.f32 %v498, %v499
        %v501 = vrot.slane %v500, 2
        %v502 = vadd.f32 %v500, %v501
        %v503 = vrot.slane %v502, 1
        %v504 = vadd.f32 %v502, %v503
        %s505 = vtos %v504
        %v506 = vstv %s505
        %v507 = vsel %vm494, %v506, %v491
        %v508 = vmul.f32 %v507, 0.0009765625
        %v509 = vsub.f32 %v456, %v508
        %v510 = vsub.f32 %v469, %v508
        %v511 = vmul.f32 %v509, %v509
        %v512 = vmul.f32 %v510, %v510
        %v513 = vadd.f32 %v511, %v512
        %514 = vadd.xlane.f32.xlu0 %v513
        %v515 = vpop.xlane.xlu0 %514
        %v516 = vsel %vm477, %v515, 0.0
        %v517 = vsel %vm479, %v516, 0.0
        %518 = vadd.xlane.f32.xlu0 %v517
        %v519 = vpop.xlane.xlu0 %518
        %v520 = vrot.slane %v519, 4
        %v521 = vadd.f32 %v519, %v520
        %v522 = vrot.slane %v521, 2
        %v523 = vadd.f32 %v521, %v522
        %v524 = vrot.slane %v523, 1
        %v525 = vadd.f32 %v523, %v524
        %s526 = vtos %v525
        %v527 = vstv %s526
        %v528 = vsel %vm477, %v527, 0.0
        %v529 = vsel %vm494, %v515, 0.0
        %v530 = vsel %vm479, %v529, 0.0
        %531 = vadd.xlane.f32.xlu0 %v530
        %v532 = vpop.xlane.xlu0 %531
        %v533 = vrot.slane %v532, 4
        %v534 = vadd.f32 %v532, %v533
        %v535 = vrot.slane %v534, 2
        %v536 = vadd.f32 %v534, %v535
        %v537 = vrot.slane %v536, 1
        %v538 = vadd.f32 %v536, %v537
        %s539 = vtos %v538
        %v540 = vstv %s539
        %v541 = vsel %vm494, %v540, %v528
        %v542 = vmul.f32 %v541, 0.0009765625
        %v543 = vadd.f32 %v542, 1e-05
        %v544 = vrsqrt.pop %v543
        %v545 = vmul.f32 %v544, %v543
        %v546 = vmul.f32 %v545, %v544
        %v547 = vmul.f32 0.5, %v546
        %v548 = vsub.f32 1.5, %v547
        %v549 = vmul.f32 %v544, %v548
        %vm550 = vweird.f32 %v543
        %vm551 = vweird.f32 %v544
        %vm552 = vmor %vm550, %vm551
        %v553 = vsel %vm552, %v544, %v549
        %v554 = vmul.f32 %v269, %v553
        %556 = vset.pattern.permute.xlu0 0
        %557 = vperm.xlu0 %556, %v554
        %v558 = vpop.permute.xlu0 %557
        %v560 = vmul.f32 %v509, %v558
        %v561 = vmul.f32 %v510, %v558
        %563 = vset.pattern.permute.xlu0 1
        %564 = vperm.xlu0 %563, %v269
        %v565 = vpop.permute.xlu0 %564
        %v567 = vadd.f32 %v560, %v565
        %v568 = vadd.f32 %v561, %v565
        %v569 = vmax.f32 %v567, 0.0
        %v570 = vmax.f32 %v568, 0.0
        %571 = vrot.lane.b32.xlu0 %v569, 17
        %v572 = vpop.permute.xlu0 %571
        %573 = vrot.lane.b32.xlu0 %v570, 17
        %v574 = vpop.permute.xlu0 %573
        %v575 = vsel %vm278, %v572, %v574
        %v576 = vsel %vm278, %v574, %v572
        %v577 = vmul.f32 %v576, %v281
        %v578 = vmul.f32 %v575, %v282
        %v579 = vpack.c.bf16 %v578, %v577
        %580 = vst [vmem:[#allocation2] sm:$0xff] %v579
        %581 = vrot.lane.b32.xlu0 %v569, 16
        %v582 = vpop.permute.xlu0 %581
        %583 = vrot.lane.b32.xlu0 %v570, 16
        %v584 = vpop.permute.xlu0 %583
        %v585 = vsel %vm291, %v582, %v584
        %v586 = vsel %vm291, %v584, %v582
        %v587 = vmul.f32 %v586, %v294
        %v588 = vmul.f32 %v585, %v295
        %v589 = vpack.c.bf16 %v588, %v587
        %590 = vst [vmem:[#allocation2 + $0x8] sm:$0xff] %v589
        %591 = vrot.lane.b32.xlu0 %v569, 15
        %v592 = vpop.permute.xlu0 %591
        %593 = vrot.lane.b32.xlu0 %v570, 15
        %v594 = vpop.permute.xlu0 %593
        %v595 = vsel %vm304, %v592, %v594
        %v596 = vsel %vm304, %v594, %v592
        %v597 = vmul.f32 %v596, %v307
        %v598 = vmul.f32 %v595, %v308
        %v599 = vpack.c.bf16 %v598, %v597
        %600 = vst [vmem:[#allocation2 + $0x10] sm:$0xff] %v599
        %601 = vrot.lane.b32.xlu0 %v569, 1
        %v602 = vpop.permute.xlu0 %601
        %603 = vrot.lane.b32.xlu0 %v570, 1
        %v604 = vpop.permute.xlu0 %603
        %v605 = vsel %vm317, %v602, %v604
        %v606 = vsel %vm317, %v604, %v602
        %v607 = vmul.f32 %v606, %v320
        %v608 = vmul.f32 %v605, %v321
        %v609 = vpack.c.bf16 %v608, %v607
        %610 = vst [vmem:[#allocation2 + $0x18] sm:$0xff] %v609
        %v611 = vpack.c.bf16 %v570, %v569
        %612 = vst [vmem:[#allocation2 + $0x20] sm:$0xff] %v611
        %613 = vrot.lane.b32.xlu0 %v569, 127
        %v614 = vpop.permute.xlu0 %613
        %615 = vrot.lane.b32.xlu0 %v570, 127
        %v616 = vpop.permute.xlu0 %615
        %v617 = vsel %vm332, %v614, %v616
        %v618 = vsel %vm332, %v616, %v614
        %v619 = vmul.f32 %v617, %v335
        %v620 = vmul.f32 %v618, %v336
        %v621 = vpack.c.bf16 %v620, %v619
        %622 = vst [vmem:[#allocation2 + $0x28] sm:$0xff] %v621
        %623 = vrot.lane.b32.xlu0 %v569, 113
        %v624 = vpop.permute.xlu0 %623
        %625 = vrot.lane.b32.xlu0 %v570, 113
        %v626 = vpop.permute.xlu0 %625
        %v627 = vsel %vm345, %v624, %v626
        %v628 = vsel %vm345, %v626, %v624
        %v629 = vmul.f32 %v627, %v348
        %v630 = vmul.f32 %v628, %v349
        %v631 = vpack.c.bf16 %v630, %v629
        %632 = vst [vmem:[#allocation2 + $0x30] sm:$0xff] %v631
        %633 = vrot.lane.b32.xlu0 %v569, 112
        %v634 = vpop.permute.xlu0 %633
        %635 = vrot.lane.b32.xlu0 %v570, 112
        %v636 = vpop.permute.xlu0 %635
        %v637 = vsel %vm358, %v634, %v636
        %v638 = vsel %vm358, %v636, %v634
        %v639 = vmul.f32 %v637, %v361
        %v640 = vmul.f32 %v638, %v362
        %v641 = vpack.c.bf16 %v640, %v639
        %642 = vst [vmem:[#allocation2 + $0x38] sm:$0xff] %v641
        %643 = vrot.lane.b32.xlu0 %v569, 111
        %v644 = vpop.permute.xlu0 %643
        %645 = vrot.lane.b32.xlu0 %v570, 111
        %v646 = vpop.permute.xlu0 %645
        %v647 = vsel %vm371, %v644, %v646
        %v648 = vsel %vm371, %v646, %v644
        %v649 = vmul.f32 %v647, %v374
        %v650 = vmul.f32 %v648, %v375
        %v651 = vpack.c.bf16 %v650, %v649
        %652 = vst [vmem:[#allocation2 + $0x40] sm:$0xff] %v651
        %v653 = vld [vmem:[%s3] sm:$0xf]
        %v654 = vld [vmem:[#allocation2] sm:$0xff]
        %v655 = vld [vmem:[#allocation2 + $0x8] sm:$0xff]
        %v656 = vld [vmem:[#allocation2 + $0x10] sm:$0xff]
        %v657 = vld [vmem:[#allocation2 + $0x18] sm:$0xff]
        %v658 = vld [vmem:[#allocation2 + $0x20] sm:$0xff]
        %v659 = vld [vmem:[#allocation2 + $0x28] sm:$0xff]
        %v660 = vld [vmem:[#allocation2 + $0x30] sm:$0xff]
        %v661 = vld [vmem:[#allocation2 + $0x38] sm:$0xff]
        %v662 = vld [vmem:[#allocation2 + $0x40] sm:$0xff]
        %v672 = vunpack.c.l.b16 %v654
        %v673 = vunpack.c.h.b16 %v654
        %v674 = vunpack.c.l.b16 %v655
        %v675 = vunpack.c.h.b16 %v655
        %v676 = vunpack.c.l.b16 %v656
        %v677 = vunpack.c.h.b16 %v656
        %v678 = vunpack.c.l.b16 %v657
        %v679 = vunpack.c.h.b16 %v657
        %v680 = vunpack.c.l.b16 %v658
        %v681 = vunpack.c.h.b16 %v658
        %v682 = vunpack.c.l.b16 %v659
        %v683 = vunpack.c.h.b16 %v659
        %v684 = vunpack.c.l.b16 %v660
        %v685 = vunpack.c.h.b16 %v660
        %v686 = vunpack.c.l.b16 %v661
        %v687 = vunpack.c.h.b16 %v661
        %v688 = vunpack.c.l.b16 %v662
        %v689 = vunpack.c.h.b16 %v662
        %v690 = vpack.c.b16 %v674, %v672
        %v691 = vpack.c.b16 %v675, %v673
        %v692 = vpack.c.b16 %v678, %v676
        %v693 = vpack.c.b16 %v679, %v677
        %v694 = vpack.c.b16 %v682, %v680
        %v695 = vpack.c.b16 %v683, %v681
        %v696 = vpack.c.b16 %v686, %v684
        %v697 = vpack.c.b16 %v687, %v685
        %v698 = vpack.c.b16 %v688, %v688
        %v699 = vpack.c.b16 %v689, %v689
        %v709 = vsel %vm435, %v653, 0
        %v712 = vsel %vm439, %v698, 0
        %v715 = vsel %vm439, %v699, 0
        %717 = vmatpush.bf16.msra.mxu0 0
        %718 = vmatpush.bf16.msra.mxu0 0
        %719 = vmatpush.bf16.msra.mxu0 0
        %720 = vmatpush.bf16.msra.mxu0 %v712
        %721 = vmatpush.bf16.msra.mxu0 %v696
        %722 = vmatpush.bf16.msra.mxu0 %v694
        %723 = vmatpush.bf16.msra.mxu0 %v692
        %724 = vmatpush.bf16.msra.mxu0 %v690
        %725 = vmatmul.bf16.gmra.mxu0 %v709
        %v726 = vpop.f32.mrf.mxu0
        %v727 = vadd.f32 0.0, %v726
        %v728 = vpop.f32.mrf.mxu0
        %729 = vdwg.mxu0
        %730 = vmatpush.bf16.msra.mxu0 0
        %731 = vmatpush.bf16.msra.mxu0 0
        %732 = vmatpush.bf16.msra.mxu0 0
        %733 = vmatpush.bf16.msra.mxu0 %v715
        %734 = vmatpush.bf16.msra.mxu0 %v697
        %735 = vmatpush.bf16.msra.mxu0 %v695
        %736 = vmatpush.bf16.msra.mxu0 %v693
        %737 = vmatpush.bf16.msra.mxu0 %v691
        %738 = vmatmul.bf16.gmra.mxu0 %v709
        %v739 = vpop.f32.mrf.mxu0
        %v740 = vadd.f32 0.0, %v739
        %v741 = vpop.f32.mrf.mxu0
        %742 = vdwg.mxu0
        %v743 = vadd.f32 %v727, %v740
        %744 = vadd.xlane.f32.xlu0 %v743
        %v745 = vpop.xlane.xlu0 %744
        %v746 = vsel %vm477, %v745, 0.0
        %v747 = vsel %vm479, %v746, 0.0
        %748 = vadd.xlane.f32.xlu0 %v747
        %v749 = vpop.xlane.xlu0 %748
        %v750 = vrot.slane %v749, 4
        %v751 = vadd.f32 %v749, %v750
        %v752 = vrot.slane %v751, 2
        %v753 = vadd.f32 %v751, %v752
        %v754 = vrot.slane %v753, 1
        %v755 = vadd.f32 %v753, %v754
        %s756 = vtos %v755
        %v757 = vstv %s756
        %v758 = vsel %vm477, %v757, 0.0
        %v759 = vsel %vm494, %v745, 0.0
        %v760 = vsel %vm479, %v759, 0.0
        %761 = vadd.xlane.f32.xlu0 %v760
        %v762 = vpop.xlane.xlu0 %761
        %v763 = vrot.slane %v762, 4
        %v764 = vadd.f32 %v762, %v763
        %v765 = vrot.slane %v764, 2
        %v766 = vadd.f32 %v764, %v765
        %v767 = vrot.slane %v766, 1
        %v768 = vadd.f32 %v766, %v767
        %s769 = vtos %v768
        %v770 = vstv %s769
        %v771 = vsel %vm494, %v770, %v758
        %v772 = vmul.f32 %v771, 0.0009765625
        %v773 = vsub.f32 %v727, %v772
        %v774 = vsub.f32 %v740, %v772
        %v775 = vmul.f32 %v773, %v773
        %v776 = vmul.f32 %v774, %v774
        %v777 = vadd.f32 %v775, %v776
        %778 = vadd.xlane.f32.xlu0 %v777
        %v779 = vpop.xlane.xlu0 %778
        %v780 = vsel %vm477, %v779, 0.0
        %v781 = vsel %vm479, %v780, 0.0
        %782 = vadd.xlane.f32.xlu0 %v781
        %v783 = vpop.xlane.xlu0 %782
        %v784 = vrot.slane %v783, 4
        %v785 = vadd.f32 %v783, %v784
        %v786 = vrot.slane %v785, 2
        %v787 = vadd.f32 %v785, %v786
        %v788 = vrot.slane %v787, 1
        %v789 = vadd.f32 %v787, %v788
        %s790 = vtos %v789
        %v791 = vstv %s790
        %v792 = vsel %vm477, %v791, 0.0
        %v793 = vsel %vm494, %v779, 0.0
        %v794 = vsel %vm479, %v793, 0.0
        %795 = vadd.xlane.f32.xlu0 %v794
        %v796 = vpop.xlane.xlu0 %795
        %v797 = vrot.slane %v796, 4
        %v798 = vadd.f32 %v796, %v797
        %v799 = vrot.slane %v798, 2
        %v800 = vadd.f32 %v798, %v799
        %v801 = vrot.slane %v800, 1
        %v802 = vadd.f32 %v800, %v801
        %s803 = vtos %v802
        %v804 = vstv %s803
        %v805 = vsel %vm494, %v804, %v792
        %v806 = vmul.f32 %v805, 0.0009765625
        %v807 = vadd.f32 %v806, 1e-05
        %v808 = vrsqrt.pop %v807
        %v809 = vmul.f32 %v808, %v807
        %v810 = vmul.f32 %v809, %v808
        %v811 = vmul.f32 0.5, %v810
        %v812 = vsub.f32 1.5, %v811
        %v813 = vmul.f32 %v808, %v812
        %vm814 = vweird.f32 %v807
        %vm815 = vweird.f32 %v808
        %vm816 = vmor %vm814, %vm815
        %v817 = vsel %vm816, %v808, %v813
        %v818 = vmul.f32 %v269, %v817
        %820 = vset.pattern.permute.xlu0 2
        %821 = vperm.xlu0 %820, %v818
        %v822 = vpop.permute.xlu0 %821
        %v824 = vmul.f32 %v773, %v822
        %v825 = vmul.f32 %v774, %v822
        %826 = vset.pattern.permute.xlu0 3
        %827 = vperm.xlu0 %826, %v269
        %v828 = vpop.permute.xlu0 %827
        %v830 = vadd.f32 %v824, %v828
        %v831 = vadd.f32 %v825, %v828
        %v832 = vadd.f32 %v830, %v263
        %v833 = vadd.f32 %v831, %v264
        %v834 = vmax.f32 %v832, 0.0
        %v835 = vmax.f32 %v833, 0.0
        %836 = vst [vmem:[%s259] sm:$0xff] %v834
        %837 = vst [vmem:[%s259 + $0x8] sm:$0xff] %v835
        %s838 = sand.u32 %s141, 1
        %s839 = scalar_lea.sflag [#allocation5], %s838
        %s840 = sand.u32 %s141, 1
        %s841 = smul.addr %s840, 16
        %s842 = scalar_lea.vmem [#allocation8], %s841
        // Predicated region
        $region49: #{tpu_custom_call.1} parent=39 // pred_check
          %p843 = pneg %p151
        $region50: #{tpu_custom_call.1} parent=39 // pred_check_branch
          %845 = sbr.rel (%p843) target = $region52
        $region51: #{tpu_custom_call.1} parent=39 // pred_region
          %s846 = smul.u32 2, %s23
          %848 = vsyncadd %s839, 0
          %s849 = smul.addr %s846, 8
          %s850 = scalar_lea.hbm %s5, %s849
          %s852 = sshll.u32 %s842, 4
          %s853 = int_to_ptr.vmem [resolvable:$true] %s852
          %s854 = sshll.u32 %s850, 4
          %s855 = int_to_ptr.hbm [resolvable:$true] %s854
          %857 = dma.vmem_to_hbm [thread:$0]  %s853, 256, %s855, %s839
        $region52: #{tpu_custom_call.1} parent=39 // pred_fallthru
          _
      $region40: #{tpu_custom_call.1} parent=5 // pred_fallthru
        _
      %p858 = scmp.le.s32.totalorder 2, %s18
      // Predicated region
      $region53: #{tpu_custom_call.1} parent=5 // pred_check
        %p859 = pneg %p858
      $region54: #{tpu_custom_call.1} parent=5 // pred_check_branch
        %861 = sbr.rel (%p859) target = $region56
      $region55: #{tpu_custom_call.1} parent=5 // pred_region
        %s862 = ssub.s32 %s18, 2
        // Predicated region
        $region57: #{tpu_custom_call.1} parent=55 // pred_check
          %p863 = pneg %p157
        $region58: #{tpu_custom_call.1} parent=55 // pred_check_branch
          %865 = sbr.rel (%p863) target = $region60
        $region59: #{tpu_custom_call.1} parent=55 // pred_region
          %s866 = sand.u32 %s142, 1
          %s867 = scalar_lea.sflag [#allocation5], %s866
          %s868 = sand.u32 %s142, 1
          %s869 = smul.addr %s868, 16
          %s870 = scalar_lea.vmem [#allocation8], %s869
          %872 = dma.done %s867, 256
        $region60: #{tpu_custom_call.1} parent=55 // pred_fallthru
          _
      $region56: #{tpu_custom_call.1} parent=5 // pred_fallthru
        _
    $region6: #{tpu_custom_call.1} parent=1 // loop_footer
      %s22 = sadd.s32 1, %s18
    $region7: #{tpu_custom_call.1} parent=1 // loop_footer_branch
      %17 = sbr.rel target = $region3
    $region8: #{tpu_custom_call.1} parent=1 // loop_exit
      _
    %873 = vsyncpa [#allocation4], 1
    %s874 = scalar_lea.sflag [#allocation4], 1
    %875 = vsyncpa %s874, 1
    %876 = vsyncpa [#allocation7], 1
    %877 = vsyncpa [#allocation5], 1
    %s878 = scalar_lea.sflag [#allocation5], 1
    %879 = vsyncpa %s878, 1

</llo_original>
